<compile_context>
chip_gen: v6e
topology: v6e:2x2x1
jax: 0.10.0
libtpu: 0.0.40
codegen_flags: <defaults>
</compile_context>

<pallas_src>
import math

import numpy as np
import jax
import jax.numpy as jnp
from jax.experimental import pallas as pl
from jax.experimental.pallas import tpu as pltpu

EPS = 1e-5
_VMEM_LIMIT = 32 * 1024 * 1024


def _pick_tile(m):
    """Largest lane tile (multiple of 128) dividing m, else the full extent."""
    for t in (1024, 512, 256, 128):
        if m >= t and m % t == 0:
            return t
    return m


# ----------------------------------------------------------------------------
# Constant spatial upsample operator (numpy -> baked as a compile-time const)
# ----------------------------------------------------------------------------


def _axis_interp_matrix(n_in, n_out):
    """(n_out, n_in) bilinear align_corners=True interpolation matrix."""
    m = np.zeros((n_out, n_in), np.float32)
    if n_in == 1:
        m[:, 0] = 1.0
        return m
    c = np.arange(n_out, dtype=np.float64) * ((n_in - 1) / (n_out - 1))
    i0 = np.clip(np.floor(c).astype(np.int64), 0, n_in - 1)
    i1 = np.minimum(i0 + 1, n_in - 1)
    f = (c - i0).astype(np.float32)
    m[np.arange(n_out), i0] += 1.0 - f
    m[np.arange(n_out), i1] += f
    return m


def _upsample_matrix(h, w, H, W):
    """U: (hw, HW) with up(feat) = feat @ U over flattened spatial axes."""
    my = _axis_interp_matrix(h, H)                       # (H, h)
    mx = _axis_interp_matrix(w, W)                       # (W, w)
    u = np.einsum('Rr,Ss->rsRS', my, mx).reshape(h * w, H * W)
    return jnp.asarray(u, jnp.float32)


# ----------------------------------------------------------------------------
# Fused Pallas kernel
# ----------------------------------------------------------------------------


def _cfsm_kernel(x4_ref, x_ref, y_ref, u_ref,
                 wh0_ref, wh1_ref, sch_ref, shh_ref,      # higher layer
                 wl0_ref, wl1_ref, scl_ref, shl_ref,      # lower layer
                 w2h_ref, w2l_ref, sc2_ref, sh2_ref,      # f2 layer
                 wtx_ref, sctx_ref, shtx_ref,             # trans_x layer
                 wty_ref, scty_ref, shty_ref,             # trans_y layer
                 o_ref,
                 hy_acc, cy_acc):
    Cl = o_ref.shape[1]

    # ---- per-batch-element work: only at the first spatial tile -------------
    @pl.when(pl.program_id(1) == 0)
    def _():
        y = y_ref[0]                                          # (Cm, hw) bf16
        # 2x2 max pool of x as elementwise max over the 4 window slabs.
        pooled = jnp.maximum(jnp.maximum(x4_ref[0, 0], x4_ref[0, 1]),
                             jnp.maximum(x4_ref[0, 2], x4_ref[0, 3]))  # (Cl, hw)
        # higher = relu(bn(Wh0 @ pooled + Wh1 @ y))
        hi = jnp.dot(wh0_ref[...], pooled, preferred_element_type=jnp.float32)
        hi = hi + jnp.dot(wh1_ref[...], y, preferred_element_type=jnp.float32)
        hi = jnp.maximum(hi * sch_ref[...] + shh_ref[...], 0.0).astype(jnp.bfloat16)
        # Cache the channel contractions reused by every spatial tile:
        #   rows [0:Cl]  = W2h @ higher   (for f2's upsample)
        #   rows [Cl:2Cl]= Wty @ y        (for f3's upsample)
        hy_acc[0:Cl, :] = jnp.dot(w2h_ref[...], hi, preferred_element_type=jnp.float32)
        hy_acc[Cl:, :] = jnp.dot(wty_ref[...], y, preferred_element_type=jnp.float32)
        #   Wly @ y  (for lower's upsample)
        cy_acc[...] = jnp.dot(wl1_ref[...], y, preferred_element_type=jnp.float32)

    # ---- per-spatial-tile work ----------------------------------------------
    x = x_ref[0]                                              # (Cl, TM) bf16
    u = u_ref[...]                                            # (hw, TM) f32

    # lower = relu(bn(Wlx @ x + up(Wly @ y)))
    low = jnp.dot(wl0_ref[...], x, preferred_element_type=jnp.float32)
    low = low + jnp.dot(cy_acc[...], u, preferred_element_type=jnp.float32)
    low = jnp.maximum(low * scl_ref[...] + shl_ref[...], 0.0)

    # Shared upsample of the cached (2*Cl, hw) slab -> f2 / f3 contributions.
    up2 = jnp.dot(hy_acc[...], u, preferred_element_type=jnp.float32)   # (2Cl, TM)
    f2 = up2[0:Cl] + jnp.dot(w2l_ref[...], low.astype(jnp.bfloat16),
                             preferred_element_type=jnp.float32)
    f2 = jnp.maximum(f2 * sc2_ref[...] + sh2_ref[...], 0.0)
    f3 = jnp.maximum(up2[Cl:] * scty_ref[...] + shty_ref[...], 0.0)

    # f1 = relu(bn(Wtx @ x))
    f1 = jnp.dot(wtx_ref[...], x, preferred_element_type=jnp.float32)
    f1 = jnp.maximum(f1 * sctx_ref[...] + shtx_ref[...], 0.0)

    o_ref[0] = (f1 + f2 + f3).astype(o_ref.dtype)


def _cfsm_pallas(x4, x_flat, y_bf, u_mat, P):
    N, Cl, HW = x_flat.shape
    _, Cm, hw = y_bf.shape
    TM = _pick_tile(HW)
    fh, fl, f2, tx, ty = P["fh"], P["fl"], P["f2"], P["tx"], P["ty"]

    def full(shape):
        return pl.BlockSpec(shape, lambda n, m, _s=shape: (0,) * len(_s))

    return pl.pallas_call(
        _cfsm_kernel,
        out_shape=jax.ShapeDtypeStruct((N, Cl, HW), jnp.float32),
        grid=(N, HW // TM),
        in_specs=[
            pl.BlockSpec((1, 4, Cl, hw), lambda n, m: (n, 0, 0, 0)),   # x 2x2 slabs
            pl.BlockSpec((1, Cl, TM),    lambda n, m: (n, 0, m)),      # x tile
            pl.BlockSpec((1, Cm, hw),    lambda n, m: (n, 0, 0)),      # y
            pl.BlockSpec((hw, TM),       lambda n, m: (0, m)),         # U tile
            full((Cm, Cl)), full((Cm, Cm)), full((Cm, 1)), full((Cm, 1)),   # fh
            full((Cl, Cl)), full((Cl, Cm)), full((Cl, 1)), full((Cl, 1)),   # fl
            full((Cl, Cm)), full((Cl, Cl)), full((Cl, 1)), full((Cl, 1)),   # f2
            full((Cl, Cl)), full((Cl, 1)), full((Cl, 1)),                   # tx
            full((Cl, Cm)), full((Cl, 1)), full((Cl, 1)),                   # ty
        ],
        out_specs=pl.BlockSpec((1, Cl, TM), lambda n, m: (n, 0, m)),
        scratch_shapes=[
            pltpu.VMEM((2 * Cl, hw), jnp.float32),    # cached W2h@higher ; Wty@y
            pltpu.VMEM((Cl, hw), jnp.float32),        # cached Wly@y
        ],
        compiler_params=pltpu.CompilerParams(
            dimension_semantics=("parallel", "arbitrary"),
            vmem_limit_bytes=_VMEM_LIMIT),
    )(x4, x_flat, y_bf, u_mat,
      fh["w0"], fh["w1"], fh["scale"], fh["shift"],
      fl["w0"], fl["w1"], fl["scale"], fl["shift"],
      f2["w0"], f2["w1"], f2["scale"], f2["shift"],
      tx["w"], tx["scale"], tx["shift"],
      ty["w"], ty["scale"], ty["shift"])


# ----------------------------------------------------------------------------
# CFSM forward
# ----------------------------------------------------------------------------


@jax.jit
def cfsm_forward(params, x_nchw, y_nchw):
    N, Cl, H, W = x_nchw.shape
    Ny, Cm, h, w = y_nchw.shape
    assert N == Ny and H == 2 * h and W == 2 * w and H % 2 == 0 and W % 2 == 0
    HW, hw = H * W, h * w

    x_bf = x_nchw.astype(jnp.bfloat16)
    x_flat = x_bf.reshape(N, Cl, HW)
    # 2x2 pooling windows as 4 lane-aligned slabs:
    #   x4[n, 2*dy+dx, c, i*w + j] = x[n, c, 2*i+dy, 2*j+dx]
    x4 = (x_bf.reshape(N, Cl, h, 2, w, 2)
              .transpose(0, 3, 5, 1, 2, 4)
              .reshape(N, 4, Cl, hw))
    y_bf = y_nchw.reshape(N, Cm, hw).astype(jnp.bfloat16)
    u_mat = _upsample_matrix(h, w, H, W)          # (hw, HW) f32 constant

    out = _cfsm_pallas(x4, x_flat, y_bf, u_mat, params)
    return out.reshape(N, Cl, H, W)


# ----------------------------------------------------------------------------
# Deterministic parameter initialization (conv bias + BN folded to scale/shift)
# ----------------------------------------------------------------------------


class KeyGen:
    def __init__(self, seed):
        self._base = jax.random.PRNGKey(seed)
        self._i = 0

    def __call__(self):
        self._i += 1
        return jax.random.fold_in(self._base, self._i)


def _bn_fold(kg, c, bias):
    gamma = 1.0 + 0.1 * jax.random.normal(kg(), (c,), jnp.float32)
    beta = 0.05 * jax.random.normal(kg(), (c,), jnp.float32)
    mean = 0.05 * jax.random.normal(kg(), (c,), jnp.float32)
    var = 1.0 + 0.1 * jnp.abs(jax.random.normal(kg(), (c,), jnp.float32))
    scale = gamma / jnp.sqrt(var + EPS)
    shift = beta + scale * (bias - mean)
    return scale.reshape(c, 1), shift.reshape(c, 1)


def _init_layer(kg, cin, cout, split=None):
    """1x1 Conv(+bias)+BN layer; optionally split the weight at `split` input
    channels so the channel-concat of its input is eliminated in-kernel."""
    w = jax.random.normal(kg(), (cout, cin), jnp.float32) / math.sqrt(cin)
    bias = 0.01 * jax.random.normal(kg(), (cout,), jnp.float32)
    scale, shift = _bn_fold(kg, cout, bias)
    p = {"scale": scale, "shift": shift}
    if split is None:
        p["w"] = w.astype(jnp.bfloat16)
    else:
        p["w0"] = w[:, :split].astype(jnp.bfloat16)
        p["w1"] = w[:, split:].astype(jnp.bfloat16)
    return p


def init_cfsm(seed, channel_less, channel_more):
    kg = KeyGen(seed)
    cl, cm = channel_less, channel_more
    return {
        # cat([down(x), y])        -> split at cl
        "fh": _init_layer(kg, cl + cm, cm, split=cl),
        # cat([x, up(y)])          -> split at cl
        "fl": _init_layer(kg, cl + cm, cl, split=cl),
        # cat([up(higher), lower]) -> split at cm
        "f2": _init_layer(kg, cl + cm, cl, split=cm),
        "tx": _init_layer(kg, cl, cl),
        "ty": _init_layer(kg, cm, cl),
    }


# ----------------------------------------------------------------------------
# Pure-JAX f32 reference (mirrors the PyTorch module, for self-validation)
# ----------------------------------------------------------------------------


def _layer_ref(p, inputs, weight_keys):
    out = 0.0
    for wk, inp in zip(weight_keys, inputs):
        w = p[wk].astype(jnp.float32)
        out = out + jnp.einsum('oc,nchw->nohw', w, inp)
    sc = p["scale"].reshape(1, -1, 1, 1)
    sh = p["shift"].reshape(1, -1, 1, 1)
    return jax.nn.relu(out * sc + sh)


def cfsm_reference(params, x, y):
    N, Cl, H, W = x.shape
    _, Cm, h, w = y.shape
    my = jnp.asarray(_axis_interp_matrix(h, H))   # (H, h)
    mx = jnp.asarray(_axis_interp_matrix(w, W))   # (W, w)
    up = lambda t: jnp.einsum('Hh,nchw,Ww->ncHW', my, t, mx)
    down = x.reshape(N, Cl, h, 2, w, 2).max(axis=(3, 5))
    higher = _layer_ref(params["fh"], (down, y), ("w0", "w1"))
    lower = _layer_ref(params["fl"], (x, up(y)), ("w0", "w1"))
    f2 = _layer_ref(params["f2"], (up(higher), lower), ("w0", "w1"))
    f1 = _layer_ref(params["tx"], (x,), ("w",))
    f3 = _layer_ref(params["ty"], (up(y),), ("w",))
    return f1 + f2 + f3


# ----------------------------------------------------------------------------


if __name__ == "__main__":
    channel_less, channel_more = 8, 16
    H = W = 16
    N = 2

    params = init_cfsm(0, channel_less, channel_more)

    key = jax.random.PRNGKey(0)
    kx, ky = jax.random.split(key)
    x = jax.random.normal(kx, (N, channel_less, H, W), jnp.float32)        # NCHW
    y = jax.random.normal(ky, (N, channel_more, H // 2, W // 2), jnp.float32)

    out = cfsm_forward(params, x, y)
    out = jax.block_until_ready(out)
    assert out.shape == (N, channel_less, H, W), out.shape
    assert bool(jnp.all(jnp.isfinite(out)))

    ref = cfsm_reference(params, x, y)
    max_err = float(jnp.max(jnp.abs(out - ref)))
    assert max_err < 1e-1, f"max abs error vs reference: {max_err}"

    print("KERNEL_OK")
</pallas_src>

<mosaic_0001>
module attributes {stable_mosaic.version = 11 : i64} {
  func.func @_cfsm_kernel(%arg0: i32, %arg1: i32, %arg2: memref<1x4x8x64xbf16, #tpu.memory_space<vmem>>, %arg3: memref<1x8x256xbf16, #tpu.memory_space<vmem>>, %arg4: memref<1x16x64xbf16, #tpu.memory_space<vmem>>, %arg5: memref<64x256xf32, #tpu.memory_space<vmem>>, %arg6: memref<16x8xbf16, #tpu.memory_space<vmem>>, %arg7: memref<16x16xbf16, #tpu.memory_space<vmem>>, %arg8: memref<16x1xf32, #tpu.memory_space<vmem>>, %arg9: memref<16x1xf32, #tpu.memory_space<vmem>>, %arg10: memref<8x8xbf16, #tpu.memory_space<vmem>>, %arg11: memref<8x16xbf16, #tpu.memory_space<vmem>>, %arg12: memref<8x1xf32, #tpu.memory_space<vmem>>, %arg13: memref<8x1xf32, #tpu.memory_space<vmem>>, %arg14: memref<8x16xbf16, #tpu.memory_space<vmem>>, %arg15: memref<8x8xbf16, #tpu.memory_space<vmem>>, %arg16: memref<8x1xf32, #tpu.memory_space<vmem>>, %arg17: memref<8x1xf32, #tpu.memory_space<vmem>>, %arg18: memref<8x8xbf16, #tpu.memory_space<vmem>>, %arg19: memref<8x1xf32, #tpu.memory_space<vmem>>, %arg20: memref<8x1xf32, #tpu.memory_space<vmem>>, %arg21: memref<8x16xbf16, #tpu.memory_space<vmem>>, %arg22: memref<8x1xf32, #tpu.memory_space<vmem>>, %arg23: memref<8x1xf32, #tpu.memory_space<vmem>>, %arg24: memref<1x8x256xf32, #tpu.memory_space<vmem>>, %arg25: memref<16x64xf32, #tpu.memory_space<vmem>>, %arg26: memref<8x64xf32, #tpu.memory_space<vmem>>) attributes {dimension_semantics = [#tpu.dimension_semantics<parallel>, #tpu.dimension_semantics<arbitrary>], iteration_bounds = array<i64: 2, 1>, scalar_prefetch = 0 : i64, scratch_operands = 2 : i64, tpu.core_type = #tpu.core_type<tc>, window_params = [{transform_indices = @transform_0, window_bounds = array<i64: 1, 4, 8, 64>}, {transform_indices = @transform_1, window_bounds = array<i64: 1, 8, 256>}, {transform_indices = @transform_2, window_bounds = array<i64: 1, 16, 64>}, {transform_indices = @transform_3, window_bounds = array<i64: 64, 256>}, {pipeline_mode = #tpu.pipeline_mode<synchronous>, transform_indices = @transform_4, window_bounds = array<i64: 16, 8>}, {pipeline_mode = #tpu.pipeline_mode<synchronous>, transform_indices = @transform_5, window_bounds = array<i64: 16, 16>}, {pipeline_mode = #tpu.pipeline_mode<synchronous>, transform_indices = @transform_6, window_bounds = array<i64: 16, 1>}, {pipeline_mode = #tpu.pipeline_mode<synchronous>, transform_indices = @transform_7, window_bounds = array<i64: 16, 1>}, {pipeline_mode = #tpu.pipeline_mode<synchronous>, transform_indices = @transform_8, window_bounds = array<i64: 8, 8>}, {pipeline_mode = #tpu.pipeline_mode<synchronous>, transform_indices = @transform_9, window_bounds = array<i64: 8, 16>}, {pipeline_mode = #tpu.pipeline_mode<synchronous>, transform_indices = @transform_10, window_bounds = array<i64: 8, 1>}, {pipeline_mode = #tpu.pipeline_mode<synchronous>, transform_indices = @transform_11, window_bounds = array<i64: 8, 1>}, {pipeline_mode = #tpu.pipeline_mode<synchronous>, transform_indices = @transform_12, window_bounds = array<i64: 8, 16>}, {pipeline_mode = #tpu.pipeline_mode<synchronous>, transform_indices = @transform_13, window_bounds = array<i64: 8, 8>}, {pipeline_mode = #tpu.pipeline_mode<synchronous>, transform_indices = @transform_14, window_bounds = array<i64: 8, 1>}, {pipeline_mode = #tpu.pipeline_mode<synchronous>, transform_indices = @transform_15, window_bounds = array<i64: 8, 1>}, {pipeline_mode = #tpu.pipeline_mode<synchronous>, transform_indices = @transform_16, window_bounds = array<i64: 8, 8>}, {pipeline_mode = #tpu.pipeline_mode<synchronous>, transform_indices = @transform_17, window_bounds = array<i64: 8, 1>}, {pipeline_mode = #tpu.pipeline_mode<synchronous>, transform_indices = @transform_18, window_bounds = array<i64: 8, 1>}, {pipeline_mode = #tpu.pipeline_mode<synchronous>, transform_indices = @transform_19, window_bounds = array<i64: 8, 16>}, {pipeline_mode = #tpu.pipeline_mode<synchronous>, transform_indices = @transform_20, window_bounds = array<i64: 8, 1>}, {pipeline_mode = #tpu.pipeline_mode<synchronous>, transform_indices = @transform_21, window_bounds = array<i64: 8, 1>}, {transform_indices = @transform_22, window_bounds = array<i64: 1, 8, 256>}]} {
    %c0_i32 = arith.constant 0 : i32
    %0 = arith.cmpi eq, %arg1, %c0_i32 : i32
    %1 = arith.extui %0 : i1 to i32
    %c0_i32_0 = arith.constant 0 : i32
    %2 = arith.cmpi ne, %1, %c0_i32_0 : i32
    scf.if %2 {
      %c0_42 = arith.constant 0 : index
      %c0_43 = arith.constant 0 : index
      %c0_44 = arith.constant 0 : index
      %58 = vector.load %arg4[%c0_42, %c0_43, %c0_44] : memref<1x16x64xbf16, #tpu.memory_space<vmem>>, vector<1x16x64xbf16>
      %59 = vector.shape_cast %58 : vector<1x16x64xbf16> to vector<16x64xbf16>
      %c0_45 = arith.constant 0 : index
      %c0_46 = arith.constant 0 : index
      %c0_47 = arith.constant 0 : index
      %c0_48 = arith.constant 0 : index
      %60 = vector.load %arg2[%c0_45, %c0_46, %c0_47, %c0_48] : memref<1x4x8x64xbf16, #tpu.memory_space<vmem>>, vector<1x1x8x64xbf16>
      %61 = vector.shape_cast %60 : vector<1x1x8x64xbf16> to vector<8x64xbf16>
      %c0_49 = arith.constant 0 : index
      %c1 = arith.constant 1 : index
      %c0_50 = arith.constant 0 : index
      %c0_51 = arith.constant 0 : index
      %62 = vector.load %arg2[%c0_49, %c1, %c0_50, %c0_51] : memref<1x4x8x64xbf16, #tpu.memory_space<vmem>>, vector<1x1x8x64xbf16>
      %63 = vector.shape_cast %62 : vector<1x1x8x64xbf16> to vector<8x64xbf16>
      %64 = arith.maximumf %61, %63 : vector<8x64xbf16>
      %c0_52 = arith.constant 0 : index
      %c2 = arith.constant 2 : index
      %c0_53 = arith.constant 0 : index
      %c0_54 = arith.constant 0 : index
      %65 = vector.load %arg2[%c0_52, %c2, %c0_53, %c0_54] : memref<1x4x8x64xbf16, #tpu.memory_space<vmem>>, vector<1x1x8x64xbf16>
      %66 = vector.shape_cast %65 : vector<1x1x8x64xbf16> to vector<8x64xbf16>
      %c0_55 = arith.constant 0 : index
      %c3 = arith.constant 3 : index
      %c0_56 = arith.constant 0 : index
      %c0_57 = arith.constant 0 : index
      %67 = vector.load %arg2[%c0_55, %c3, %c0_56, %c0_57] : memref<1x4x8x64xbf16, #tpu.memory_space<vmem>>, vector<1x1x8x64xbf16>
      %68 = vector.shape_cast %67 : vector<1x1x8x64xbf16> to vector<8x64xbf16>
      %69 = arith.maximumf %66, %68 : vector<8x64xbf16>
      %70 = arith.maximumf %64, %69 : vector<8x64xbf16>
      %c0_58 = arith.constant 0 : index
      %c0_59 = arith.constant 0 : index
      %71 = vector.load %arg6[%c0_58, %c0_59] : memref<16x8xbf16, #tpu.memory_space<vmem>>, vector<16x8xbf16>
      %cst_60 = arith.constant dense<0.000000e+00> : vector<16x64xf32>
      %72 = tpu.matmul %71, %70, %cst_60 {dimension_numbers = #tpu.dot_dimension_numbers<[1], [0], [0], [1], [0, 0, 1, 1], [], []>} : vector<16x8xbf16>, vector<8x64xbf16>, vector<16x64xf32> -> vector<16x64xf32>
      %c0_61 = arith.constant 0 : index
      %c0_62 = arith.constant 0 : index
      %73 = vector.load %arg7[%c0_61, %c0_62] : memref<16x16xbf16, #tpu.memory_space<vmem>>, vector<16x16xbf16>
      %cst_63 = arith.constant dense<0.000000e+00> : vector<16x64xf32>
      %74 = tpu.matmul %73, %59, %cst_63 {dimension_numbers = #tpu.dot_dimension_numbers<[1], [0], [0], [1], [0, 0, 1, 1], [], []>} : vector<16x16xbf16>, vector<16x64xbf16>, vector<16x64xf32> -> vector<16x64xf32>
      %75 = arith.addf %72, %74 : vector<16x64xf32>
      %c0_64 = arith.constant 0 : index
      %c0_65 = arith.constant 0 : index
      %76 = vector.load %arg8[%c0_64, %c0_65] : memref<16x1xf32, #tpu.memory_space<vmem>>, vector<16x1xf32>
      %77 = vector.broadcast %76 : vector<16x1xf32> to vector<16x64xf32>
      %78 = arith.mulf %75, %77 : vector<16x64xf32>
      %c0_66 = arith.constant 0 : index
      %c0_67 = arith.constant 0 : index
      %79 = vector.load %arg9[%c0_66, %c0_67] : memref<16x1xf32, #tpu.memory_space<vmem>>, vector<16x1xf32>
      %80 = vector.broadcast %79 : vector<16x1xf32> to vector<16x64xf32>
      %81 = arith.addf %78, %80 : vector<16x64xf32>
      %cst_68 = arith.constant 0.000000e+00 : f32
      %82 = vector.broadcast %cst_68 : f32 to vector<16x64xf32>
      %83 = arith.maximumf %81, %82 : vector<16x64xf32>
      %84 = arith.truncf %83 : vector<16x64xf32> to vector<16x64xbf16>
      %c0_69 = arith.constant 0 : index
      %c0_70 = arith.constant 0 : index
      %85 = vector.load %arg14[%c0_69, %c0_70] : memref<8x16xbf16, #tpu.memory_space<vmem>>, vector<8x16xbf16>
      %cst_71 = arith.constant dense<0.000000e+00> : vector<8x64xf32>
      %86 = tpu.matmul %85, %84, %cst_71 {dimension_numbers = #tpu.dot_dimension_numbers<[1], [0], [0], [1], [0, 0, 1, 1], [], []>} : vector<8x16xbf16>, vector<16x64xbf16>, vector<8x64xf32> -> vector<8x64xf32>
      %c0_72 = arith.constant 0 : index
      %c0_73 = arith.constant 0 : index
      %87 = vector.load %arg25[%c0_72, %c0_73] : memref<16x64xf32, #tpu.memory_space<vmem>>, vector<8x64xf32>
      tpu.vector_store %arg25[%c0_72, %c0_73], %86 {strides = array<i32>} : memref<16x64xf32, #tpu.memory_space<vmem>>, vector<8x64xf32>,
      %c0_74 = arith.constant 0 : index
      %c0_75 = arith.constant 0 : index
      %88 = vector.load %arg21[%c0_74, %c0_75] : memref<8x16xbf16, #tpu.memory_space<vmem>>, vector<8x16xbf16>
      %cst_76 = arith.constant dense<0.000000e+00> : vector<8x64xf32>
      %89 = tpu.matmul %88, %59, %cst_76 {dimension_numbers = #tpu.dot_dimension_numbers<[1], [0], [0], [1], [0, 0, 1, 1], [], []>} : vector<8x16xbf16>, vector<16x64xbf16>, vector<8x64xf32> -> vector<8x64xf32>
      %c8 = arith.constant 8 : index
      %c0_77 = arith.constant 0 : index
      %90 = vector.load %arg25[%c8, %c0_77] : memref<16x64xf32, #tpu.memory_space<vmem>>, vector<8x64xf32>
      tpu.vector_store %arg25[%c8, %c0_77], %89 {strides = array<i32>} : memref<16x64xf32, #tpu.memory_space<vmem>>, vector<8x64xf32>,
      %c0_78 = arith.constant 0 : index
      %c0_79 = arith.constant 0 : index
      %91 = vector.load %arg11[%c0_78, %c0_79] : memref<8x16xbf16, #tpu.memory_space<vmem>>, vector<8x16xbf16>
      %cst_80 = arith.constant dense<0.000000e+00> : vector<8x64xf32>
      %92 = tpu.matmul %91, %59, %cst_80 {dimension_numbers = #tpu.dot_dimension_numbers<[1], [0], [0], [1], [0, 0, 1, 1], [], []>} : vector<8x16xbf16>, vector<16x64xbf16>, vector<8x64xf32> -> vector<8x64xf32>
      %c0_81 = arith.constant 0 : index
      %c0_82 = arith.constant 0 : index
      %93 = vector.load %arg26[%c0_81, %c0_82] : memref<8x64xf32, #tpu.memory_space<vmem>>, vector<8x64xf32>
      tpu.vector_store %arg26[%c0_81, %c0_82], %92 {strides = array<i32>} : memref<8x64xf32, #tpu.memory_space<vmem>>, vector<8x64xf32>,
    } else {
    }
    %c0 = arith.constant 0 : index
    %c0_1 = arith.constant 0 : index
    %c0_2 = arith.constant 0 : index
    %3 = vector.load %arg3[%c0, %c0_1, %c0_2] : memref<1x8x256xbf16, #tpu.memory_space<vmem>>, vector<1x8x256xbf16>
    %4 = vector.shape_cast %3 : vector<1x8x256xbf16> to vector<8x256xbf16>
    %c0_3 = arith.constant 0 : index
    %c0_4 = arith.constant 0 : index
    %5 = vector.load %arg5[%c0_3, %c0_4] : memref<64x256xf32, #tpu.memory_space<vmem>>, vector<64x256xf32>
    %c0_5 = arith.constant 0 : index
    %c0_6 = arith.constant 0 : index
    %6 = vector.load %arg10[%c0_5, %c0_6] : memref<8x8xbf16, #tpu.memory_space<vmem>>, vector<8x8xbf16>
    %cst = arith.constant dense<0.000000e+00> : vector<8x256xf32>
    %7 = tpu.matmul %6, %4, %cst {dimension_numbers = #tpu.dot_dimension_numbers<[1], [0], [0], [1], [0, 0, 1, 1], [], []>} : vector<8x8xbf16>, vector<8x256xbf16>, vector<8x256xf32> -> vector<8x256xf32>
    %c0_7 = arith.constant 0 : index
    %c0_8 = arith.constant 0 : index
    %8 = vector.load %arg26[%c0_7, %c0_8] : memref<8x64xf32, #tpu.memory_space<vmem>>, vector<8x64xf32>
    %cst_9 = arith.constant dense<0.000000e+00> : vector<8x256xf32>
    %9 = tpu.matmul %8, %5, %cst_9 {dimension_numbers = #tpu.dot_dimension_numbers<[1], [0], [0], [1], [0, 0, 1, 1], [], []>} : vector<8x64xf32>, vector<64x256xf32>, vector<8x256xf32> -> vector<8x256xf32>
    %10 = arith.addf %7, %9 : vector<8x256xf32>
    %c0_10 = arith.constant 0 : index
    %c0_11 = arith.constant 0 : index
    %11 = vector.load %arg12[%c0_10, %c0_11] : memref<8x1xf32, #tpu.memory_space<vmem>>, vector<8x1xf32>
    %12 = vector.broadcast %11 : vector<8x1xf32> to vector<8x256xf32>
    %13 = arith.mulf %10, %12 : vector<8x256xf32>
    %c0_12 = arith.constant 0 : index
    %c0_13 = arith.constant 0 : index
    %14 = vector.load %arg13[%c0_12, %c0_13] : memref<8x1xf32, #tpu.memory_space<vmem>>, vector<8x1xf32>
    %15 = vector.broadcast %14 : vector<8x1xf32> to vector<8x256xf32>
    %16 = arith.addf %13, %15 : vector<8x256xf32>
    %cst_14 = arith.constant 0.000000e+00 : f32
    %17 = vector.broadcast %cst_14 : f32 to vector<8x256xf32>
    %18 = arith.maximumf %16, %17 : vector<8x256xf32>
    %c0_15 = arith.constant 0 : index
    %c0_16 = arith.constant 0 : index
    %19 = vector.load %arg25[%c0_15, %c0_16] : memref<16x64xf32, #tpu.memory_space<vmem>>, vector<16x64xf32>
    %cst_17 = arith.constant dense<0.000000e+00> : vector<16x256xf32>
    %20 = tpu.matmul %19, %5, %cst_17 {dimension_numbers = #tpu.dot_dimension_numbers<[1], [0], [0], [1], [0, 0, 1, 1], [], []>} : vector<16x64xf32>, vector<64x256xf32>, vector<16x256xf32> -> vector<16x256xf32>
    %21 = vector.extract_strided_slice %20 {offsets = [0, 0], sizes = [8, 256], strides = [1, 1]} : vector<16x256xf32> to vector<8x256xf32>
    %c0_18 = arith.constant 0 : index
    %c0_19 = arith.constant 0 : index
    %22 = vector.load %arg15[%c0_18, %c0_19] : memref<8x8xbf16, #tpu.memory_space<vmem>>, vector<8x8xbf16>
    %23 = arith.truncf %18 : vector<8x256xf32> to vector<8x256xbf16>
    %cst_20 = arith.constant dense<0.000000e+00> : vector<8x256xf32>
    %24 = tpu.matmul %22, %23, %cst_20 {dimension_numbers = #tpu.dot_dimension_numbers<[1], [0], [0], [1], [0, 0, 1, 1], [], []>} : vector<8x8xbf16>, vector<8x256xbf16>, vector<8x256xf32> -> vector<8x256xf32>
    %25 = arith.addf %21, %24 : vector<8x256xf32>
    %c0_21 = arith.constant 0 : index
    %c0_22 = arith.constant 0 : index
    %26 = vector.load %arg16[%c0_21, %c0_22] : memref<8x1xf32, #tpu.memory_space<vmem>>, vector<8x1xf32>
    %27 = vector.broadcast %26 : vector<8x1xf32> to vector<8x256xf32>
    %28 = arith.mulf %25, %27 : vector<8x256xf32>
    %c0_23 = arith.constant 0 : index
    %c0_24 = arith.constant 0 : index
    %29 = vector.load %arg17[%c0_23, %c0_24] : memref<8x1xf32, #tpu.memory_space<vmem>>, vector<8x1xf32>
    %30 = vector.broadcast %29 : vector<8x1xf32> to vector<8x256xf32>
    %31 = arith.addf %28, %30 : vector<8x256xf32>
    %cst_25 = arith.constant 0.000000e+00 : f32
    %32 = vector.broadcast %cst_25 : f32 to vector<8x256xf32>
    %33 = arith.maximumf %31, %32 : vector<8x256xf32>
    %34 = vector.extract_strided_slice %20 {offsets = [8, 0], sizes = [8, 256], strides = [1, 1]} : vector<16x256xf32> to vector<8x256xf32>
    %c0_26 = arith.constant 0 : index
    %c0_27 = arith.constant 0 : index
    %35 = vector.load %arg22[%c0_26, %c0_27] : memref<8x1xf32, #tpu.memory_space<vmem>>, vector<8x1xf32>
    %36 = vector.broadcast %35 : vector<8x1xf32> to vector<8x256xf32>
    %37 = arith.mulf %34, %36 : vector<8x256xf32>
    %c0_28 = arith.constant 0 : index
    %c0_29 = arith.constant 0 : index
    %38 = vector.load %arg23[%c0_28, %c0_29] : memref<8x1xf32, #tpu.memory_space<vmem>>, vector<8x1xf32>
    %39 = vector.broadcast %38 : vector<8x1xf32> to vector<8x256xf32>
    %40 = arith.addf %37, %39 : vector<8x256xf32>
    %cst_30 = arith.constant 0.000000e+00 : f32
    %41 = vector.broadcast %cst_30 : f32 to vector<8x256xf32>
    %42 = arith.maximumf %40, %41 : vector<8x256xf32>
    %c0_31 = arith.constant 0 : index
    %c0_32 = arith.constant 0 : index
    %43 = vector.load %arg18[%c0_31, %c0_32] : memref<8x8xbf16, #tpu.memory_space<vmem>>, vector<8x8xbf16>
    %cst_33 = arith.constant dense<0.000000e+00> : vector<8x256xf32>
    %44 = tpu.matmul %43, %4, %cst_33 {dimension_numbers = #tpu.dot_dimension_numbers<[1], [0], [0], [1], [0, 0, 1, 1], [], []>} : vector<8x8xbf16>, vector<8x256xbf16>, vector<8x256xf32> -> vector<8x256xf32>
    %c0_34 = arith.constant 0 : index
    %c0_35 = arith.constant 0 : index
    %45 = vector.load %arg19[%c0_34, %c0_35] : memref<8x1xf32, #tpu.memory_space<vmem>>, vector<8x1xf32>
    %46 = vector.broadcast %45 : vector<8x1xf32> to vector<8x256xf32>
    %47 = arith.mulf %44, %46 : vector<8x256xf32>
    %c0_36 = arith.constant 0 : index
    %c0_37 = arith.constant 0 : index
    %48 = vector.load %arg20[%c0_36, %c0_37] : memref<8x1xf32, #tpu.memory_space<vmem>>, vector<8x1xf32>
    %49 = vector.broadcast %48 : vector<8x1xf32> to vector<8x256xf32>
    %50 = arith.addf %47, %49 : vector<8x256xf32>
    %cst_38 = arith.constant 0.000000e+00 : f32
    %51 = vector.broadcast %cst_38 : f32 to vector<8x256xf32>
    %52 = arith.maximumf %50, %51 : vector<8x256xf32>
    %53 = arith.addf %52, %33 : vector<8x256xf32>
    %54 = arith.addf %53, %42 : vector<8x256xf32>
    %c0_39 = arith.constant 0 : index
    %c0_40 = arith.constant 0 : index
    %c0_41 = arith.constant 0 : index
    %55 = vector.load %arg24[%c0_39, %c0_40, %c0_41] : memref<1x8x256xf32, #tpu.memory_space<vmem>>, vector<1x8x256xf32>
    %56 = vector.shape_cast %55 : vector<1x8x256xf32> to vector<8x256xf32>
    %57 = vector.shape_cast %54 : vector<8x256xf32> to vector<1x8x256xf32>
    tpu.vector_store %arg24[%c0_39, %c0_40, %c0_41], %57 {strides = array<i32>} : memref<1x8x256xf32, #tpu.memory_space<vmem>>, vector<1x8x256xf32>,
    return
  }
  func.func @transform_0(%arg0: i32, %arg1: i32) -> (i32, i32, i32, i32) {
    %c0_i32 = arith.constant 0 : i32
    %c0_i32_0 = arith.constant 0 : i32
    %c0_i32_1 = arith.constant 0 : i32
    %c0_i32_2 = arith.constant 0 : i32
    return %arg0, %c0_i32, %c0_i32_0, %c0_i32_1 : i32, i32, i32, i32
  }
  func.func @transform_1(%arg0: i32, %arg1: i32) -> (i32, i32, i32) {
    %c0_i32 = arith.constant 0 : i32
    %c0_i32_0 = arith.constant 0 : i32
    return %arg0, %c0_i32, %arg1 : i32, i32, i32
  }
  func.func @transform_2(%arg0: i32, %arg1: i32) -> (i32, i32, i32) {
    %c0_i32 = arith.constant 0 : i32
    %c0_i32_0 = arith.constant 0 : i32
    %c0_i32_1 = arith.constant 0 : i32
    return %arg0, %c0_i32, %c0_i32_0 : i32, i32, i32
  }
  func.func @transform_3(%arg0: i32, %arg1: i32) -> (i32, i32) {
    %c0_i32 = arith.constant 0 : i32
    %c0_i32_0 = arith.constant 0 : i32
    return %c0_i32, %arg1 : i32, i32
  }
  func.func @transform_4(%arg0: i32, %arg1: i32) -> (i32, i32) {
    %c0_i32 = arith.constant 0 : i32
    %c0_i32_0 = arith.constant 0 : i32
    %c0_i32_1 = arith.constant 0 : i32
    return %c0_i32, %c0_i32_0 : i32, i32
  }
  func.func @transform_5(%arg0: i32, %arg1: i32) -> (i32, i32) {
    %c0_i32 = arith.constant 0 : i32
    %c0_i32_0 = arith.constant 0 : i32
    %c0_i32_1 = arith.constant 0 : i32
    return %c0_i32, %c0_i32_0 : i32, i32
  }
  func.func @transform_6(%arg0: i32, %arg1: i32) -> (i32, i32) {
    %c0_i32 = arith.constant 0 : i32
    %c0_i32_0 = arith.constant 0 : i32
    %c0_i32_1 = arith.constant 0 : i32
    return %c0_i32, %c0_i32_0 : i32, i32
  }
  func.func @transform_7(%arg0: i32, %arg1: i32) -> (i32, i32) {
    %c0_i32 = arith.constant 0 : i32
    %c0_i32_0 = arith.constant 0 : i32
    %c0_i32_1 = arith.constant 0 : i32
    return %c0_i32, %c0_i32_0 : i32, i32
  }
  func.func @transform_8(%arg0: i32, %arg1: i32) -> (i32, i32) {
    %c0_i32 = arith.constant 0 : i32
    %c0_i32_0 = arith.constant 0 : i32
    %c0_i32_1 = arith.constant 0 : i32
    return %c0_i32, %c0_i32_0 : i32, i32
  }
  func.func @transform_9(%arg0: i32, %arg1: i32) -> (i32, i32) {
    %c0_i32 = arith.constant 0 : i32
    %c0_i32_0 = arith.constant 0 : i32
    %c0_i32_1 = arith.constant 0 : i32
    return %c0_i32, %c0_i32_0 : i32, i32
  }
  func.func @transform_10(%arg0: i32, %arg1: i32) -> (i32, i32) {
    %c0_i32 = arith.constant 0 : i32
    %c0_i32_0 = arith.constant 0 : i32
    %c0_i32_1 = arith.constant 0 : i32
    return %c0_i32, %c0_i32_0 : i32, i32
  }
  func.func @transform_11(%arg0: i32, %arg1: i32) -> (i32, i32) {
    %c0_i32 = arith.constant 0 : i32
    %c0_i32_0 = arith.constant 0 : i32
    %c0_i32_1 = arith.constant 0 : i32
    return %c0_i32, %c0_i32_0 : i32, i32
  }
  func.func @transform_12(%arg0: i32, %arg1: i32) -> (i32, i32) {
    %c0_i32 = arith.constant 0 : i32
    %c0_i32_0 = arith.constant 0 : i32
    %c0_i32_1 = arith.constant 0 : i32
    return %c0_i32, %c0_i32_0 : i32, i32
  }
  func.func @transform_13(%arg0: i32, %arg1: i32) -> (i32, i32) {
    %c0_i32 = arith.constant 0 : i32
    %c0_i32_0 = arith.constant 0 : i32
    %c0_i32_1 = arith.constant 0 : i32
    return %c0_i32, %c0_i32_0 : i32, i32
  }
  func.func @transform_14(%arg0: i32, %arg1: i32) -> (i32, i32) {
    %c0_i32 = arith.constant 0 : i32
    %c0_i32_0 = arith.constant 0 : i32
    %c0_i32_1 = arith.constant 0 : i32
    return %c0_i32, %c0_i32_0 : i32, i32
  }
  func.func @transform_15(%arg0: i32, %arg1: i32) -> (i32, i32) {
    %c0_i32 = arith.constant 0 : i32
    %c0_i32_0 = arith.constant 0 : i32
    %c0_i32_1 = arith.constant 0 : i32
    return %c0_i32, %c0_i32_0 : i32, i32
  }
  func.func @transform_16(%arg0: i32, %arg1: i32) -> (i32, i32) {
    %c0_i32 = arith.constant 0 : i32
    %c0_i32_0 = arith.constant 0 : i32
    %c0_i32_1 = arith.constant 0 : i32
    return %c0_i32, %c0_i32_0 : i32, i32
  }
  func.func @transform_17(%arg0: i32, %arg1: i32) -> (i32, i32) {
    %c0_i32 = arith.constant 0 : i32
    %c0_i32_0 = arith.constant 0 : i32
    %c0_i32_1 = arith.constant 0 : i32
    return %c0_i32, %c0_i32_0 : i32, i32
  }
  func.func @transform_18(%arg0: i32, %arg1: i32) -> (i32, i32) {
    %c0_i32 = arith.constant 0 : i32
    %c0_i32_0 = arith.constant 0 : i32
    %c0_i32_1 = arith.constant 0 : i32
    return %c0_i32, %c0_i32_0 : i32, i32
  }
  func.func @transform_19(%arg0: i32, %arg1: i32) -> (i32, i32) {
    %c0_i32 = arith.constant 0 : i32
    %c0_i32_0 = arith.constant 0 : i32
    %c0_i32_1 = arith.constant 0 : i32
    return %c0_i32, %c0_i32_0 : i32, i32
  }
  func.func @transform_20(%arg0: i32, %arg1: i32) -> (i32, i32) {
    %c0_i32 = arith.constant 0 : i32
    %c0_i32_0 = arith.constant 0 : i32
    %c0_i32_1 = arith.constant 0 : i32
    return %c0_i32, %c0_i32_0 : i32, i32
  }
  func.func @transform_21(%arg0: i32, %arg1: i32) -> (i32, i32) {
    %c0_i32 = arith.constant 0 : i32
    %c0_i32_0 = arith.constant 0 : i32
    %c0_i32_1 = arith.constant 0 : i32
    return %c0_i32, %c0_i32_0 : i32, i32
  }
  func.func @transform_22(%arg0: i32, %arg1: i32) -> (i32, i32, i32) {
    %c0_i32 = arith.constant 0 : i32
    %c0_i32_0 = arith.constant 0 : i32
    return %arg0, %c0_i32, %arg1 : i32, i32, i32
  }
}

</mosaic_0001>

<llo_original>
// kernel: cfsm_forward.1
$region0: #{cfsm_forward.1}
  #allocation0 [shape = 'u32[]', space=smem, size = 0x4, offset = 0x4, fixed_abs, tag = 'smem constant byte address 0x4 - core index']
  #allocation1 [shape = 'u32[144,128]{1,0:T(1,128)}', space=vmem, size = 0x12000, scoped, tag = 'internal scratch']
  #allocation2 [shape = 'f32[16,64]{1,0:T(8,128)}', space=vmem, size = 0x2000, scoped, tag = 'scratch operand']
  #allocation3 [shape = 'f32[8,64]{1,0:T(8,128)}', space=vmem, size = 0x1000, scoped, tag = 'scratch operand']
  %s0 = inlined_call_operand.vmem [shape: bf16[2,4,8,64], index: 0, kind: input, shape index: {}]
  %s1 = inlined_call_operand.vmem [shape: bf16[2,8,256], index: 1, kind: input, shape index: {}]
  %s2 = inlined_call_operand.vmem [shape: bf16[2,16,64], index: 2, kind: input, shape index: {}]
  %s3 = inlined_call_operand.vmem [shape: f32[64,256], index: 3, kind: input, shape index: {}]
  %s4 = inlined_call_operand.vmem [shape: bf16[16,8], index: 4, kind: input, shape index: {}]
  %s5 = inlined_call_operand.vmem [shape: bf16[16,16], index: 5, kind: input, shape index: {}]
  %s6 = inlined_call_operand.vmem [shape: f32[16,1], index: 6, kind: input, shape index: {}]
  %s7 = inlined_call_operand.vmem [shape: f32[16,1], index: 7, kind: input, shape index: {}]
  %s8 = inlined_call_operand.vmem [shape: bf16[8,8], index: 8, kind: input, shape index: {}]
  %s9 = inlined_call_operand.vmem [shape: bf16[8,16], index: 9, kind: input, shape index: {}]
  %s10 = inlined_call_operand.vmem [shape: f32[8,1], index: 10, kind: input, shape index: {}]
  %s11 = inlined_call_operand.vmem [shape: f32[8,1], index: 11, kind: input, shape index: {}]
  %s12 = inlined_call_operand.vmem [shape: bf16[8,16], index: 12, kind: input, shape index: {}]
  %s13 = inlined_call_operand.vmem [shape: bf16[8,8], index: 13, kind: input, shape index: {}]
  %s14 = inlined_call_operand.vmem [shape: f32[8,1], index: 14, kind: input, shape index: {}]
  %s15 = inlined_call_operand.vmem [shape: f32[8,1], index: 15, kind: input, shape index: {}]
  %s16 = inlined_call_operand.vmem [shape: bf16[8,8], index: 16, kind: input, shape index: {}]
  %s17 = inlined_call_operand.vmem [shape: f32[8,1], index: 17, kind: input, shape index: {}]
  %s18 = inlined_call_operand.vmem [shape: f32[8,1], index: 18, kind: input, shape index: {}]
  %s19 = inlined_call_operand.vmem [shape: bf16[8,16], index: 19, kind: input, shape index: {}]
  %s20 = inlined_call_operand.vmem [shape: f32[8,1], index: 20, kind: input, shape index: {}]
  %s21 = inlined_call_operand.vmem [shape: f32[8,1], index: 21, kind: input, shape index: {}]
  %s22 = inlined_call_operand.vmem [shape: f32[2,8,256], index: 22, kind: output, shape index: {}]
  %s23 = sld [smem:[#allocation0]]
  $region125: #{cfsm_forward.1} parent=0
    _
  %s25 = ssub.s32 1, %s23
  %s26 = scalar_select 0, %s25, %s23
  loop: start=0, step=1, limit=4
  $region2: #{cfsm_forward.1} parent=0 // loop_pre_header
    _
  $region3: #{cfsm_forward.1} parent=0 // loop_header
    %s28 = sphi 0, %s32
    %p29 = scmp.ge.s32.totalorder %s28, 4
    %s35 = sphi 0, %s47
    %s36 = sphi 0, %s43
    %s37 = sphi 0, %s35
    %s38 = sphi 0, %s36
    %s39 = sphi 0, %s37
    %s40 = sphi 0, %s38
    %s50 = sphi 0, %s52
    %s53 = sphi 0, %s50
    %s54 = sphi 0, %s53
    %s70 = sphi 0, %s54
    %s78 = sphi 0, %s80
    %s81 = sphi 0, %s78
    %s82 = sphi 0, %s81
    %s98 = sphi 0, %s82
    %s104 = sphi 0, %s106
    %s107 = sphi 0, %s104
    %s108 = sphi 0, %s107
    %s124 = sphi 0, %s108
    %s130 = sphi 0, %s132
    %s133 = sphi 0, %s130
    %s134 = sphi 0, %s133
    %s150 = sphi 0, %s134
    %s154 = sphi 0, %s154
    %s156 = sphi 0, %s154
    %s157 = sphi 0, %s156
    %s171 = sphi 0, %s157
    %s175 = sphi 0, %s175
    %s177 = sphi 0, %s175
    %s178 = sphi 0, %s177
    %s192 = sphi 0, %s178
    %s196 = sphi 0, %s196
    %s198 = sphi 0, %s196
    %s199 = sphi 0, %s198
    %s213 = sphi 0, %s199
    %s217 = sphi 0, %s217
    %s219 = sphi 0, %s217
    %s220 = sphi 0, %s219
    %s234 = sphi 0, %s220
    %s238 = sphi 0, %s238
    %s240 = sphi 0, %s238
    %s241 = sphi 0, %s240
    %s255 = sphi 0, %s241
    %s259 = sphi 0, %s259
    %s261 = sphi 0, %s259
    %s262 = sphi 0, %s261
    %s276 = sphi 0, %s262
    %s280 = sphi 0, %s280
    %s282 = sphi 0, %s280
    %s283 = sphi 0, %s282
    %s297 = sphi 0, %s283
    %s301 = sphi 0, %s301
    %s303 = sphi 0, %s301
    %s304 = sphi 0, %s303
    %s318 = sphi 0, %s304
    %s322 = sphi 0, %s322
    %s324 = sphi 0, %s322
    %s325 = sphi 0, %s324
    %s339 = sphi 0, %s325
    %s343 = sphi 0, %s343
    %s345 = sphi 0, %s343
    %s346 = sphi 0, %s345
    %s360 = sphi 0, %s346
    %s364 = sphi 0, %s364
    %s366 = sphi 0, %s364
    %s367 = sphi 0, %s366
    %s381 = sphi 0, %s367
    %s385 = sphi 0, %s385
    %s387 = sphi 0, %s385
    %s388 = sphi 0, %s387
    %s402 = sphi 0, %s388
    %s406 = sphi 0, %s406
    %s408 = sphi 0, %s406
    %s409 = sphi 0, %s408
    %s423 = sphi 0, %s409
    %s427 = sphi 0, %s427
    %s429 = sphi 0, %s427
    %s430 = sphi 0, %s429
    %s444 = sphi 0, %s430
    %s448 = sphi 0, %s448
    %s450 = sphi 0, %s448
    %s451 = sphi 0, %s450
    %s465 = sphi 0, %s451
    %s469 = sphi 0, %s469
    %s471 = sphi 0, %s469
    %s472 = sphi 0, %s471
    %s486 = sphi 0, %s472
    %s490 = sphi 0, %s490
    %s492 = sphi 0, %s490
    %s493 = sphi 0, %s492
    %s507 = sphi 0, %s493
    %s511 = sphi 0, %s511
    %s513 = sphi 0, %s511
    %s514 = sphi 0, %s513
    %s528 = sphi 0, %s514
    %s536 = sphi 0, %s538
    %s539 = sphi 0, %s536
    %s540 = sphi 0, %s539
    %s556 = sphi 0, %s540
  $region4: #{cfsm_forward.1} parent=0 // loop_header_branch
    %31 = sbr.rel (%p29) target = $region8
  $region5: #{cfsm_forward.1} parent=0 // loop_body
    %s33 = ssub.s32 %s28, 1
    %s34 = ssub.s32 %s28, 2
    %s41 = sadd.s32 1, %s36
    %p42 = scmp.ge.s32.totalorder %s41, 1
    %s43 = scalar_select %p42, 0, %s41
    %s44 = sadd.s32 1, %s35
    %s45 = scalar_select %p42, %s44, %s35
    %p46 = scmp.ge.s32.totalorder %s45, 2
    %s47 = scalar_select %p46, 0, %s45
    %s48 = ssub.s32 %s35, %s47
    %p49 = scmp.eq.s32.totalorder %s48, 0
    %s51 = sadd.s32 %s50, 1
    %s52 = scalar_select %p49, %s50, %s51
    %p55 = pneg %p49
    %p56 = scmp.eq.s32.totalorder %s28, 1
    %p57 = por %p55, %p56
    %p58 = scmp.ne.s32.totalorder %s50, %s53
    %p59 = scmp.eq.s32.totalorder %s28, 0
    %p60 = por %p58, %p59
    %p61 = scmp.ne.s32.totalorder %s50, %s53
    %p62 = scmp.eq.s32.totalorder %s33, 1
    %p63 = por %p61, %p62
    %p64 = scmp.ne.s32.totalorder %s53, %s54
    %p65 = scmp.eq.s32.totalorder %s33, 0
    %p66 = por %p64, %p65
    %p67 = scmp.ne.s32.totalorder %s53, %s54
    %p68 = scmp.eq.s32.totalorder %s34, 1
    %p69 = por %p67, %p68
    %p71 = scmp.ne.s32.totalorder %s54, %s70
    %p72 = scmp.eq.s32.totalorder %s34, 0
    %p73 = por %p71, %p72
    %s74 = ssub.s32 %s35, %s47
    %s75 = ssub.s32 %s36, %s43
    %s76 = sor.u32 %s74, %s75
    %p77 = scmp.eq.s32.totalorder %s76, 0
    %s79 = sadd.s32 %s78, 1
    %s80 = scalar_select %p77, %s78, %s79
    %p83 = pneg %p77
    %p84 = scmp.eq.s32.totalorder %s28, 1
    %p85 = por %p83, %p84
    %p86 = scmp.ne.s32.totalorder %s78, %s81
    %p87 = scmp.eq.s32.totalorder %s28, 0
    %p88 = por %p86, %p87
    %p89 = scmp.ne.s32.totalorder %s78, %s81
    %p90 = scmp.eq.s32.totalorder %s33, 1
    %p91 = por %p89, %p90
    %p92 = scmp.ne.s32.totalorder %s81, %s82
    %p93 = scmp.eq.s32.totalorder %s33, 0
    %p94 = por %p92, %p93
    %p95 = scmp.ne.s32.totalorder %s81, %s82
    %p96 = scmp.eq.s32.totalorder %s34, 1
    %p97 = por %p95, %p96
    %p99 = scmp.ne.s32.totalorder %s82, %s98
    %p100 = scmp.eq.s32.totalorder %s34, 0
    %p101 = por %p99, %p100
    %s102 = ssub.s32 %s35, %s47
    %p103 = scmp.eq.s32.totalorder %s102, 0
    %s105 = sadd.s32 %s104, 1
    %s106 = scalar_select %p103, %s104, %s105
    %p109 = pneg %p103
    %p110 = scmp.eq.s32.totalorder %s28, 1
    %p111 = por %p109, %p110
    %p112 = scmp.ne.s32.totalorder %s104, %s107
    %p113 = scmp.eq.s32.totalorder %s28, 0
    %p114 = por %p112, %p113
    %p115 = scmp.ne.s32.totalorder %s104, %s107
    %p116 = scmp.eq.s32.totalorder %s33, 1
    %p117 = por %p115, %p116
    %p118 = scmp.ne.s32.totalorder %s107, %s108
    %p119 = scmp.eq.s32.totalorder %s33, 0
    %p120 = por %p118, %p119
    %p121 = scmp.ne.s32.totalorder %s107, %s108
    %p122 = scmp.eq.s32.totalorder %s34, 1
    %p123 = por %p121, %p122
    %p125 = scmp.ne.s32.totalorder %s108, %s124
    %p126 = scmp.eq.s32.totalorder %s34, 0
    %p127 = por %p125, %p126
    %s128 = ssub.s32 %s36, %s43
    %p129 = scmp.eq.s32.totalorder %s128, 0
    %s131 = sadd.s32 %s130, 1
    %s132 = scalar_select %p129, %s130, %s131
    %p135 = pneg %p129
    %p136 = scmp.eq.s32.totalorder %s28, 1
    %p137 = por %p135, %p136
    %p138 = scmp.ne.s32.totalorder %s130, %s133
    %p139 = scmp.eq.s32.totalorder %s28, 0
    %p140 = por %p138, %p139
    %p141 = scmp.ne.s32.totalorder %s130, %s133
    %p142 = scmp.eq.s32.totalorder %s33, 1
    %p143 = por %p141, %p142
    %p144 = scmp.ne.s32.totalorder %s133, %s134
    %p145 = scmp.eq.s32.totalorder %s33, 0
    %p146 = por %p144, %p145
    %p147 = scmp.ne.s32.totalorder %s133, %s134
    %p148 = scmp.eq.s32.totalorder %s34, 1
    %p149 = por %p147, %p148
    %p151 = scmp.ne.s32.totalorder %s134, %s150
    %p152 = scmp.eq.s32.totalorder %s34, 0
    %p153 = por %p151, %p152
    %s155 = sadd.s32 %s154, 1
    %p158 = scmp.eq.s32.totalorder %s28, 1
    %p159 = scmp.ne.s32.totalorder %s154, %s156
    %p160 = scmp.eq.s32.totalorder %s28, 0
    %p161 = por %p159, %p160
    %p162 = scmp.ne.s32.totalorder %s154, %s156
    %p163 = scmp.eq.s32.totalorder %s33, 1
    %p164 = por %p162, %p163
    %p165 = scmp.ne.s32.totalorder %s156, %s157
    %p166 = scmp.eq.s32.totalorder %s33, 0
    %p167 = por %p165, %p166
    %p168 = scmp.ne.s32.totalorder %s156, %s157
    %p169 = scmp.eq.s32.totalorder %s34, 1
    %p170 = por %p168, %p169
    %p172 = scmp.ne.s32.totalorder %s157, %s171
    %p173 = scmp.eq.s32.totalorder %s34, 0
    %p174 = por %p172, %p173
    %s176 = sadd.s32 %s175, 1
    %p179 = scmp.eq.s32.totalorder %s28, 1
    %p180 = scmp.ne.s32.totalorder %s175, %s177
    %p181 = scmp.eq.s32.totalorder %s28, 0
    %p182 = por %p180, %p181
    %p183 = scmp.ne.s32.totalorder %s175, %s177
    %p184 = scmp.eq.s32.totalorder %s33, 1
    %p185 = por %p183, %p184
    %p186 = scmp.ne.s32.totalorder %s177, %s178
    %p187 = scmp.eq.s32.totalorder %s33, 0
    %p188 = por %p186, %p187
    %p189 = scmp.ne.s32.totalorder %s177, %s178
    %p190 = scmp.eq.s32.totalorder %s34, 1
    %p191 = por %p189, %p190
    %p193 = scmp.ne.s32.totalorder %s178, %s192
    %p194 = scmp.eq.s32.totalorder %s34, 0
    %p195 = por %p193, %p194
    %s197 = sadd.s32 %s196, 1
    %p200 = scmp.eq.s32.totalorder %s28, 1
    %p201 = scmp.ne.s32.totalorder %s196, %s198
    %p202 = scmp.eq.s32.totalorder %s28, 0
    %p203 = por %p201, %p202
    %p204 = scmp.ne.s32.totalorder %s196, %s198
    %p205 = scmp.eq.s32.totalorder %s33, 1
    %p206 = por %p204, %p205
    %p207 = scmp.ne.s32.totalorder %s198, %s199
    %p208 = scmp.eq.s32.totalorder %s33, 0
    %p209 = por %p207, %p208
    %p210 = scmp.ne.s32.totalorder %s198, %s199
    %p211 = scmp.eq.s32.totalorder %s34, 1
    %p212 = por %p210, %p211
    %p214 = scmp.ne.s32.totalorder %s199, %s213
    %p215 = scmp.eq.s32.totalorder %s34, 0
    %p216 = por %p214, %p215
    %s218 = sadd.s32 %s217, 1
    %p221 = scmp.eq.s32.totalorder %s28, 1
    %p222 = scmp.ne.s32.totalorder %s217, %s219
    %p223 = scmp.eq.s32.totalorder %s28, 0
    %p224 = por %p222, %p223
    %p225 = scmp.ne.s32.totalorder %s217, %s219
    %p226 = scmp.eq.s32.totalorder %s33, 1
    %p227 = por %p225, %p226
    %p228 = scmp.ne.s32.totalorder %s219, %s220
    %p229 = scmp.eq.s32.totalorder %s33, 0
    %p230 = por %p228, %p229
    %p231 = scmp.ne.s32.totalorder %s219, %s220
    %p232 = scmp.eq.s32.totalorder %s34, 1
    %p233 = por %p231, %p232
    %p235 = scmp.ne.s32.totalorder %s220, %s234
    %p236 = scmp.eq.s32.totalorder %s34, 0
    %p237 = por %p235, %p236
    %s239 = sadd.s32 %s238, 1
    %p242 = scmp.eq.s32.totalorder %s28, 1
    %p243 = scmp.ne.s32.totalorder %s238, %s240
    %p244 = scmp.eq.s32.totalorder %s28, 0
    %p245 = por %p243, %p244
    %p246 = scmp.ne.s32.totalorder %s238, %s240
    %p247 = scmp.eq.s32.totalorder %s33, 1
    %p248 = por %p246, %p247
    %p249 = scmp.ne.s32.totalorder %s240, %s241
    %p250 = scmp.eq.s32.totalorder %s33, 0
    %p251 = por %p249, %p250
    %p252 = scmp.ne.s32.totalorder %s240, %s241
    %p253 = scmp.eq.s32.totalorder %s34, 1
    %p254 = por %p252, %p253
    %p256 = scmp.ne.s32.totalorder %s241, %s255
    %p257 = scmp.eq.s32.totalorder %s34, 0
    %p258 = por %p256, %p257
    %s260 = sadd.s32 %s259, 1
    %p263 = scmp.eq.s32.totalorder %s28, 1
    %p264 = scmp.ne.s32.totalorder %s259, %s261
    %p265 = scmp.eq.s32.totalorder %s28, 0
    %p266 = por %p264, %p265
    %p267 = scmp.ne.s32.totalorder %s259, %s261
    %p268 = scmp.eq.s32.totalorder %s33, 1
    %p269 = por %p267, %p268
    %p270 = scmp.ne.s32.totalorder %s261, %s262
    %p271 = scmp.eq.s32.totalorder %s33, 0
    %p272 = por %p270, %p271
    %p273 = scmp.ne.s32.totalorder %s261, %s262
    %p274 = scmp.eq.s32.totalorder %s34, 1
    %p275 = por %p273, %p274
    %p277 = scmp.ne.s32.totalorder %s262, %s276
    %p278 = scmp.eq.s32.totalorder %s34, 0
    %p279 = por %p277, %p278
    %s281 = sadd.s32 %s280, 1
    %p284 = scmp.eq.s32.totalorder %s28, 1
    %p285 = scmp.ne.s32.totalorder %s280, %s282
    %p286 = scmp.eq.s32.totalorder %s28, 0
    %p287 = por %p285, %p286
    %p288 = scmp.ne.s32.totalorder %s280, %s282
    %p289 = scmp.eq.s32.totalorder %s33, 1
    %p290 = por %p288, %p289
    %p291 = scmp.ne.s32.totalorder %s282, %s283
    %p292 = scmp.eq.s32.totalorder %s33, 0
    %p293 = por %p291, %p292
    %p294 = scmp.ne.s32.totalorder %s282, %s283
    %p295 = scmp.eq.s32.totalorder %s34, 1
    %p296 = por %p294, %p295
    %p298 = scmp.ne.s32.totalorder %s283, %s297
    %p299 = scmp.eq.s32.totalorder %s34, 0
    %p300 = por %p298, %p299
    %s302 = sadd.s32 %s301, 1
    %p305 = scmp.eq.s32.totalorder %s28, 1
    %p306 = scmp.ne.s32.totalorder %s301, %s303
    %p307 = scmp.eq.s32.totalorder %s28, 0
    %p308 = por %p306, %p307
    %p309 = scmp.ne.s32.totalorder %s301, %s303
    %p310 = scmp.eq.s32.totalorder %s33, 1
    %p311 = por %p309, %p310
    %p312 = scmp.ne.s32.totalorder %s303, %s304
    %p313 = scmp.eq.s32.totalorder %s33, 0
    %p314 = por %p312, %p313
    %p315 = scmp.ne.s32.totalorder %s303, %s304
    %p316 = scmp.eq.s32.totalorder %s34, 1
    %p317 = por %p315, %p316
    %p319 = scmp.ne.s32.totalorder %s304, %s318
    %p320 = scmp.eq.s32.totalorder %s34, 0
    %p321 = por %p319, %p320
    %s323 = sadd.s32 %s322, 1
    %p326 = scmp.eq.s32.totalorder %s28, 1
    %p327 = scmp.ne.s32.totalorder %s322, %s324
    %p328 = scmp.eq.s32.totalorder %s28, 0
    %p329 = por %p327, %p328
    %p330 = scmp.ne.s32.totalorder %s322, %s324
    %p331 = scmp.eq.s32.totalorder %s33, 1
    %p332 = por %p330, %p331
    %p333 = scmp.ne.s32.totalorder %s324, %s325
    %p334 = scmp.eq.s32.totalorder %s33, 0
    %p335 = por %p333, %p334
    %p336 = scmp.ne.s32.totalorder %s324, %s325
    %p337 = scmp.eq.s32.totalorder %s34, 1
    %p338 = por %p336, %p337
    %p340 = scmp.ne.s32.totalorder %s325, %s339
    %p341 = scmp.eq.s32.totalorder %s34, 0
    %p342 = por %p340, %p341
    %s344 = sadd.s32 %s343, 1
    %p347 = scmp.eq.s32.totalorder %s28, 1
    %p348 = scmp.ne.s32.totalorder %s343, %s345
    %p349 = scmp.eq.s32.totalorder %s28, 0
    %p350 = por %p348, %p349
    %p351 = scmp.ne.s32.totalorder %s343, %s345
    %p352 = scmp.eq.s32.totalorder %s33, 1
    %p353 = por %p351, %p352
    %p354 = scmp.ne.s32.totalorder %s345, %s346
    %p355 = scmp.eq.s32.totalorder %s33, 0
    %p356 = por %p354, %p355
    %p357 = scmp.ne.s32.totalorder %s345, %s346
    %p358 = scmp.eq.s32.totalorder %s34, 1
    %p359 = por %p357, %p358
    %p361 = scmp.ne.s32.totalorder %s346, %s360
    %p362 = scmp.eq.s32.totalorder %s34, 0
    %p363 = por %p361, %p362
    %s365 = sadd.s32 %s364, 1
    %p368 = scmp.eq.s32.totalorder %s28, 1
    %p369 = scmp.ne.s32.totalorder %s364, %s366
    %p370 = scmp.eq.s32.totalorder %s28, 0
    %p371 = por %p369, %p370
    %p372 = scmp.ne.s32.totalorder %s364, %s366
    %p373 = scmp.eq.s32.totalorder %s33, 1
    %p374 = por %p372, %p373
    %p375 = scmp.ne.s32.totalorder %s366, %s367
    %p376 = scmp.eq.s32.totalorder %s33, 0
    %p377 = por %p375, %p376
    %p378 = scmp.ne.s32.totalorder %s366, %s367
    %p379 = scmp.eq.s32.totalorder %s34, 1
    %p380 = por %p378, %p379
    %p382 = scmp.ne.s32.totalorder %s367, %s381
    %p383 = scmp.eq.s32.totalorder %s34, 0
    %p384 = por %p382, %p383
    %s386 = sadd.s32 %s385, 1
    %p389 = scmp.eq.s32.totalorder %s28, 1
    %p390 = scmp.ne.s32.totalorder %s385, %s387
    %p391 = scmp.eq.s32.totalorder %s28, 0
    %p392 = por %p390, %p391
    %p393 = scmp.ne.s32.totalorder %s385, %s387
    %p394 = scmp.eq.s32.totalorder %s33, 1
    %p395 = por %p393, %p394
    %p396 = scmp.ne.s32.totalorder %s387, %s388
    %p397 = scmp.eq.s32.totalorder %s33, 0
    %p398 = por %p396, %p397
    %p399 = scmp.ne.s32.totalorder %s387, %s388
    %p400 = scmp.eq.s32.totalorder %s34, 1
    %p401 = por %p399, %p400
    %p403 = scmp.ne.s32.totalorder %s388, %s402
    %p404 = scmp.eq.s32.totalorder %s34, 0
    %p405 = por %p403, %p404
    %s407 = sadd.s32 %s406, 1
    %p410 = scmp.eq.s32.totalorder %s28, 1
    %p411 = scmp.ne.s32.totalorder %s406, %s408
    %p412 = scmp.eq.s32.totalorder %s28, 0
    %p413 = por %p411, %p412
    %p414 = scmp.ne.s32.totalorder %s406, %s408
    %p415 = scmp.eq.s32.totalorder %s33, 1
    %p416 = por %p414, %p415
    %p417 = scmp.ne.s32.totalorder %s408, %s409
    %p418 = scmp.eq.s32.totalorder %s33, 0
    %p419 = por %p417, %p418
    %p420 = scmp.ne.s32.totalorder %s408, %s409
    %p421 = scmp.eq.s32.totalorder %s34, 1
    %p422 = por %p420, %p421
    %p424 = scmp.ne.s32.totalorder %s409, %s423
    %p425 = scmp.eq.s32.totalorder %s34, 0
    %p426 = por %p424, %p425
    %s428 = sadd.s32 %s427, 1
    %p431 = scmp.eq.s32.totalorder %s28, 1
    %p432 = scmp.ne.s32.totalorder %s427, %s429
    %p433 = scmp.eq.s32.totalorder %s28, 0
    %p434 = por %p432, %p433
    %p435 = scmp.ne.s32.totalorder %s427, %s429
    %p436 = scmp.eq.s32.totalorder %s33, 1
    %p437 = por %p435, %p436
    %p438 = scmp.ne.s32.totalorder %s429, %s430
    %p439 = scmp.eq.s32.totalorder %s33, 0
    %p440 = por %p438, %p439
    %p441 = scmp.ne.s32.totalorder %s429, %s430
    %p442 = scmp.eq.s32.totalorder %s34, 1
    %p443 = por %p441, %p442
    %p445 = scmp.ne.s32.totalorder %s430, %s444
    %p446 = scmp.eq.s32.totalorder %s34, 0
    %p447 = por %p445, %p446
    %s449 = sadd.s32 %s448, 1
    %p452 = scmp.eq.s32.totalorder %s28, 1
    %p453 = scmp.ne.s32.totalorder %s448, %s450
    %p454 = scmp.eq.s32.totalorder %s28, 0
    %p455 = por %p453, %p454
    %p456 = scmp.ne.s32.totalorder %s448, %s450
    %p457 = scmp.eq.s32.totalorder %s33, 1
    %p458 = por %p456, %p457
    %p459 = scmp.ne.s32.totalorder %s450, %s451
    %p460 = scmp.eq.s32.totalorder %s33, 0
    %p461 = por %p459, %p460
    %p462 = scmp.ne.s32.totalorder %s450, %s451
    %p463 = scmp.eq.s32.totalorder %s34, 1
    %p464 = por %p462, %p463
    %p466 = scmp.ne.s32.totalorder %s451, %s465
    %p467 = scmp.eq.s32.totalorder %s34, 0
    %p468 = por %p466, %p467
    %s470 = sadd.s32 %s469, 1
    %p473 = scmp.eq.s32.totalorder %s28, 1
    %p474 = scmp.ne.s32.totalorder %s469, %s471
    %p475 = scmp.eq.s32.totalorder %s28, 0
    %p476 = por %p474, %p475
    %p477 = scmp.ne.s32.totalorder %s469, %s471
    %p478 = scmp.eq.s32.totalorder %s33, 1
    %p479 = por %p477, %p478
    %p480 = scmp.ne.s32.totalorder %s471, %s472
    %p481 = scmp.eq.s32.totalorder %s33, 0
    %p482 = por %p480, %p481
    %p483 = scmp.ne.s32.totalorder %s471, %s472
    %p484 = scmp.eq.s32.totalorder %s34, 1
    %p485 = por %p483, %p484
    %p487 = scmp.ne.s32.totalorder %s472, %s486
    %p488 = scmp.eq.s32.totalorder %s34, 0
    %p489 = por %p487, %p488
    %s491 = sadd.s32 %s490, 1
    %p494 = scmp.eq.s32.totalorder %s28, 1
    %p495 = scmp.ne.s32.totalorder %s490, %s492
    %p496 = scmp.eq.s32.totalorder %s28, 0
    %p497 = por %p495, %p496
    %p498 = scmp.ne.s32.totalorder %s490, %s492
    %p499 = scmp.eq.s32.totalorder %s33, 1
    %p500 = por %p498, %p499
    %p501 = scmp.ne.s32.totalorder %s492, %s493
    %p502 = scmp.eq.s32.totalorder %s33, 0
    %p503 = por %p501, %p502
    %p504 = scmp.ne.s32.totalorder %s492, %s493
    %p505 = scmp.eq.s32.totalorder %s34, 1
    %p506 = por %p504, %p505
    %p508 = scmp.ne.s32.totalorder %s493, %s507
    %p509 = scmp.eq.s32.totalorder %s34, 0
    %p510 = por %p508, %p509
    %s512 = sadd.s32 %s511, 1
    %p515 = scmp.eq.s32.totalorder %s28, 1
    %p516 = scmp.ne.s32.totalorder %s511, %s513
    %p517 = scmp.eq.s32.totalorder %s28, 0
    %p518 = por %p516, %p517
    %p519 = scmp.ne.s32.totalorder %s511, %s513
    %p520 = scmp.eq.s32.totalorder %s33, 1
    %p521 = por %p519, %p520
    %p522 = scmp.ne.s32.totalorder %s513, %s514
    %p523 = scmp.eq.s32.totalorder %s33, 0
    %p524 = por %p522, %p523
    %p525 = scmp.ne.s32.totalorder %s513, %s514
    %p526 = scmp.eq.s32.totalorder %s34, 1
    %p527 = por %p525, %p526
    %p529 = scmp.ne.s32.totalorder %s514, %s528
    %p530 = scmp.eq.s32.totalorder %s34, 0
    %p531 = por %p529, %p530
    %s532 = ssub.s32 %s35, %s47
    %s533 = ssub.s32 %s36, %s43
    %s534 = sor.u32 %s532, %s533
    %p535 = scmp.eq.s32.totalorder %s534, 0
    %s537 = sadd.s32 %s536, 1
    %s538 = scalar_select %p535, %s536, %s537
    %p541 = pneg %p535
    %p542 = scmp.eq.s32.totalorder %s28, 1
    %p543 = por %p541, %p542
    %p544 = scmp.ne.s32.totalorder %s536, %s539
    %p545 = scmp.eq.s32.totalorder %s28, 0
    %p546 = por %p544, %p545
    %p547 = scmp.ne.s32.totalorder %s536, %s539
    %p548 = scmp.eq.s32.totalorder %s33, 1
    %p549 = por %p547, %p548
    %p550 = scmp.ne.s32.totalorder %s539, %s540
    %p551 = scmp.eq.s32.totalorder %s33, 0
    %p552 = por %p550, %p551
    %p553 = scmp.ne.s32.totalorder %s539, %s540
    %p554 = scmp.eq.s32.totalorder %s34, 1
    %p555 = por %p553, %p554
    %p557 = scmp.ne.s32.totalorder %s540, %s556
    %p558 = scmp.eq.s32.totalorder %s34, 0
    %p559 = por %p557, %p558
    %p560 = scmp.le.s32.totalorder 1, %s28
    %p561 = scmp.lt.s32.totalorder %s28, 3
    %p562 = pnand %p560, %p561
    %p563 = pneg %p562
    // Predicated region
    $region9: #{cfsm_forward.1} parent=5 // pred_check
      _
    $region10: #{cfsm_forward.1} parent=5 // pred_check_branch
      %565 = sbr.rel (%p562) target = $region12
    $region11: #{cfsm_forward.1} parent=5 // pred_region
      %s566 = ssub.s32 %s28, 1
      // Predicated region
      $region13: #{cfsm_forward.1} parent=11 // pred_check
        %p567 = pneg %p146
      $region14: #{cfsm_forward.1} parent=11 // pred_check_branch
        %569 = sbr.rel (%p567) target = $region16
      $region15: #{cfsm_forward.1} parent=11 // pred_region
        %s570 = smul.u32 2, %s38
        %p571 = scmp.lt.s32.totalorder %s570, 1
        %s572 = scalar_select %p571, %s570, 1
        %s573 = smul.addr %s572, 8
        %s574 = scalar_lea.vmem %s3, %s573
        %s575 = smul.u32 2, %s38
      $region16: #{cfsm_forward.1} parent=11 // pred_fallthru
        _
      // Predicated region
      $region17: #{cfsm_forward.1} parent=11 // pred_check
        %p576 = pneg %p167
      $region18: #{cfsm_forward.1} parent=11 // pred_check_branch
        %578 = sbr.rel (%p576) target = $region20
      $region19: #{cfsm_forward.1} parent=11 // pred_region
        _
      $region20: #{cfsm_forward.1} parent=11 // pred_fallthru
        _
      // Predicated region
      $region21: #{cfsm_forward.1} parent=11 // pred_check
        %p579 = pneg %p188
      $region22: #{cfsm_forward.1} parent=11 // pred_check_branch
        %581 = sbr.rel (%p579) target = $region24
      $region23: #{cfsm_forward.1} parent=11 // pred_region
        _
      $region24: #{cfsm_forward.1} parent=11 // pred_fallthru
        _
      // Predicated region
      $region25: #{cfsm_forward.1} parent=11 // pred_check
        %p582 = pneg %p209
      $region26: #{cfsm_forward.1} parent=11 // pred_check_branch
        %584 = sbr.rel (%p582) target = $region28
      $region27: #{cfsm_forward.1} parent=11 // pred_region
        _
      $region28: #{cfsm_forward.1} parent=11 // pred_fallthru
        _
      // Predicated region
      $region29: #{cfsm_forward.1} parent=11 // pred_check
        %p585 = pneg %p230
      $region30: #{cfsm_forward.1} parent=11 // pred_check_branch
        %587 = sbr.rel (%p585) target = $region32
      $region31: #{cfsm_forward.1} parent=11 // pred_region
        _
      $region32: #{cfsm_forward.1} parent=11 // pred_fallthru
        _
      // Predicated region
      $region33: #{cfsm_forward.1} parent=11 // pred_check
        %p588 = pneg %p251
      $region34: #{cfsm_forward.1} parent=11 // pred_check_branch
        %590 = sbr.rel (%p588) target = $region36
      $region35: #{cfsm_forward.1} parent=11 // pred_region
        _
      $region36: #{cfsm_forward.1} parent=11 // pred_fallthru
        _
      // Predicated region
      $region37: #{cfsm_forward.1} parent=11 // pred_check
        %p591 = pneg %p272
      $region38: #{cfsm_forward.1} parent=11 // pred_check_branch
        %593 = sbr.rel (%p591) target = $region40
      $region39: #{cfsm_forward.1} parent=11 // pred_region
        _
      $region40: #{cfsm_forward.1} parent=11 // pred_fallthru
        _
      // Predicated region
      $region41: #{cfsm_forward.1} parent=11 // pred_check
        %p594 = pneg %p293
      $region42: #{cfsm_forward.1} parent=11 // pred_check_branch
        %596 = sbr.rel (%p594) target = $region44
      $region43: #{cfsm_forward.1} parent=11 // pred_region
        _
      $region44: #{cfsm_forward.1} parent=11 // pred_fallthru
        _
      // Predicated region
      $region45: #{cfsm_forward.1} parent=11 // pred_check
        %p597 = pneg %p314
      $region46: #{cfsm_forward.1} parent=11 // pred_check_branch
        %599 = sbr.rel (%p597) target = $region48
      $region47: #{cfsm_forward.1} parent=11 // pred_region
        _
      $region48: #{cfsm_forward.1} parent=11 // pred_fallthru
        _
      // Predicated region
      $region49: #{cfsm_forward.1} parent=11 // pred_check
        %p600 = pneg %p335
      $region50: #{cfsm_forward.1} parent=11 // pred_check_branch
        %602 = sbr.rel (%p600) target = $region52
      $region51: #{cfsm_forward.1} parent=11 // pred_region
        _
      $region52: #{cfsm_forward.1} parent=11 // pred_fallthru
        _
      // Predicated region
      $region53: #{cfsm_forward.1} parent=11 // pred_check
        %p603 = pneg %p356
      $region54: #{cfsm_forward.1} parent=11 // pred_check_branch
        %605 = sbr.rel (%p603) target = $region56
      $region55: #{cfsm_forward.1} parent=11 // pred_region
        _
      $region56: #{cfsm_forward.1} parent=11 // pred_fallthru
        _
      // Predicated region
      $region57: #{cfsm_forward.1} parent=11 // pred_check
        %p606 = pneg %p377
      $region58: #{cfsm_forward.1} parent=11 // pred_check_branch
        %608 = sbr.rel (%p606) target = $region60
      $region59: #{cfsm_forward.1} parent=11 // pred_region
        _
      $region60: #{cfsm_forward.1} parent=11 // pred_fallthru
        _
      // Predicated region
      $region61: #{cfsm_forward.1} parent=11 // pred_check
        %p609 = pneg %p398
      $region62: #{cfsm_forward.1} parent=11 // pred_check_branch
        %611 = sbr.rel (%p609) target = $region64
      $region63: #{cfsm_forward.1} parent=11 // pred_region
        _
      $region64: #{cfsm_forward.1} parent=11 // pred_fallthru
        _
      // Predicated region
      $region65: #{cfsm_forward.1} parent=11 // pred_check
        %p612 = pneg %p419
      $region66: #{cfsm_forward.1} parent=11 // pred_check_branch
        %614 = sbr.rel (%p612) target = $region68
      $region67: #{cfsm_forward.1} parent=11 // pred_region
        _
      $region68: #{cfsm_forward.1} parent=11 // pred_fallthru
        _
      // Predicated region
      $region69: #{cfsm_forward.1} parent=11 // pred_check
        %p615 = pneg %p440
      $region70: #{cfsm_forward.1} parent=11 // pred_check_branch
        %617 = sbr.rel (%p615) target = $region72
      $region71: #{cfsm_forward.1} parent=11 // pred_region
        _
      $region72: #{cfsm_forward.1} parent=11 // pred_fallthru
        _
      // Predicated region
      $region73: #{cfsm_forward.1} parent=11 // pred_check
        %p618 = pneg %p461
      $region74: #{cfsm_forward.1} parent=11 // pred_check_branch
        %620 = sbr.rel (%p618) target = $region76
      $region75: #{cfsm_forward.1} parent=11 // pred_region
        _
      $region76: #{cfsm_forward.1} parent=11 // pred_fallthru
        _
      // Predicated region
      $region77: #{cfsm_forward.1} parent=11 // pred_check
        %p621 = pneg %p482
      $region78: #{cfsm_forward.1} parent=11 // pred_check_branch
        %623 = sbr.rel (%p621) target = $region80
      $region79: #{cfsm_forward.1} parent=11 // pred_region
        _
      $region80: #{cfsm_forward.1} parent=11 // pred_fallthru
        _
      // Predicated region
      $region81: #{cfsm_forward.1} parent=11 // pred_check
        %p624 = pneg %p503
      $region82: #{cfsm_forward.1} parent=11 // pred_check_branch
        %626 = sbr.rel (%p624) target = $region84
      $region83: #{cfsm_forward.1} parent=11 // pred_region
        _
      $region84: #{cfsm_forward.1} parent=11 // pred_fallthru
        _
      // Predicated region
      $region85: #{cfsm_forward.1} parent=11 // pred_check
        %p627 = pneg %p524
      $region86: #{cfsm_forward.1} parent=11 // pred_check_branch
        %629 = sbr.rel (%p627) target = $region88
      $region87: #{cfsm_forward.1} parent=11 // pred_region
        _
      $region88: #{cfsm_forward.1} parent=11 // pred_fallthru
        _
    $region12: #{cfsm_forward.1} parent=5 // pred_fallthru
      _
    %p630 = scmp.lt.s32.totalorder %s28, 2
    // Predicated region
    $region89: #{cfsm_forward.1} parent=5 // pred_check
      %p631 = pneg %p630
    $region90: #{cfsm_forward.1} parent=5 // pred_check_branch
      %633 = sbr.rel (%p631) target = $region92
    $region91: #{cfsm_forward.1} parent=5 // pred_region
      // Predicated region
      $region93: #{cfsm_forward.1} parent=91 // pred_check
        %p634 = pneg %p60
      $region94: #{cfsm_forward.1} parent=91 // pred_check_branch
        %636 = sbr.rel (%p634) target = $region96
      $region95: #{cfsm_forward.1} parent=91 // pred_region
        %p637 = scmp.lt.s32.totalorder %s35, 1
        %s638 = scalar_select %p637, %s35, 1
        %s639 = smul.addr %s638, 4
        %s640 = smul.addr %s639, 4
        %s641 = scalar_lea.vmem %s0, %s640
      $region96: #{cfsm_forward.1} parent=91 // pred_fallthru
        _
      // Predicated region
      $region97: #{cfsm_forward.1} parent=91 // pred_check
        %p642 = pneg %p88
      $region98: #{cfsm_forward.1} parent=91 // pred_check_branch
        %644 = sbr.rel (%p642) target = $region100
      $region99: #{cfsm_forward.1} parent=91 // pred_region
        %s645 = smul.u32 2, %s36
        %p646 = scmp.lt.s32.totalorder %s35, 1
        %s647 = scalar_select %p646, %s35, 1
        %p648 = scmp.lt.s32.totalorder %s645, 1
        %s649 = scalar_select %p648, %s645, 1
        %s650 = smul.addr %s647, 2
        %s651 = sadd.s32 %s649, %s650
        %s652 = smul.addr %s651, 4
        %s653 = scalar_lea.vmem %s1, %s652
        %s654 = smul.u32 2, %s36
      $region100: #{cfsm_forward.1} parent=91 // pred_fallthru
        _
      // Predicated region
      $region101: #{cfsm_forward.1} parent=91 // pred_check
        %p655 = pneg %p114
      $region102: #{cfsm_forward.1} parent=91 // pred_check_branch
        %657 = sbr.rel (%p655) target = $region104
      $region103: #{cfsm_forward.1} parent=91 // pred_region
        %p658 = scmp.lt.s32.totalorder %s35, 1
        %s659 = scalar_select %p658, %s35, 1
        %s660 = smul.addr %s659, 2
        %s661 = smul.addr %s660, 4
        %s662 = scalar_lea.vmem %s2, %s661
      $region104: #{cfsm_forward.1} parent=91 // pred_fallthru
        _
    $region92: #{cfsm_forward.1} parent=5 // pred_fallthru
      _
    %p663 = scmp.le.s32.totalorder 1, %s28
    %p664 = scmp.lt.s32.totalorder %s28, 3
    %p665 = pnand %p663, %p664
    %p666 = pneg %p665
    // Predicated region
    $region105: #{cfsm_forward.1} parent=5 // pred_check
      _
    $region106: #{cfsm_forward.1} parent=5 // pred_check_branch
      %668 = sbr.rel (%p665) target = $region108
    $region107: #{cfsm_forward.1} parent=5 // pred_region
      %s669 = ssub.s32 %s28, 1
      %p670 = scmp.lt.s32.totalorder %s37, 1
      %s671 = scalar_select %p670, %s37, 1
      %s672 = smul.addr %s671, 4
      %s673 = smul.addr %s672, 4
      %s674 = scalar_lea.vmem %s0, %s673
      %p675 = pneg %p66
      %p676 = pneg %p63
      %s677 = smul.u32 2, %s38
      %p678 = scmp.lt.s32.totalorder %s37, 1
      %s679 = scalar_select %p678, %s37, 1
      %p680 = scmp.lt.s32.totalorder %s677, 1
      %s681 = scalar_select %p680, %s677, 1
      %s682 = smul.addr %s679, 2
      %s683 = sadd.s32 %s681, %s682
      %s684 = smul.addr %s683, 4
      %s685 = scalar_lea.vmem %s1, %s684
      %p686 = pneg %p94
      %p687 = pneg %p91
      %p688 = scmp.lt.s32.totalorder %s37, 1
      %s689 = scalar_select %p688, %s37, 1
      %s690 = smul.addr %s689, 2
      %s691 = smul.addr %s690, 4
      %s692 = scalar_lea.vmem %s2, %s691
      %p693 = pneg %p120
      %p694 = pneg %p117
      %s695 = smul.u32 2, %s38
      %p696 = scmp.lt.s32.totalorder %s695, 1
      %s697 = scalar_select %p696, %s695, 1
      %s698 = smul.addr %s697, 8
      %s699 = scalar_lea.vmem %s3, %s698
      %p700 = pneg %p146
      %p701 = pneg %p143
      %p702 = pneg %p167
      %p703 = pneg %p164
      %p704 = pneg %p188
      %p705 = pneg %p185
      %p706 = pneg %p209
      %p707 = pneg %p206
      %p708 = pneg %p230
      %p709 = pneg %p227
      %p710 = pneg %p251
      %p711 = pneg %p248
      %p712 = pneg %p272
      %p713 = pneg %p269
      %p714 = pneg %p293
      %p715 = pneg %p290
      %p716 = pneg %p314
      %p717 = pneg %p311
      %p718 = pneg %p335
      %p719 = pneg %p332
      %p720 = pneg %p356
      %p721 = pneg %p353
      %p722 = pneg %p377
      %p723 = pneg %p374
      %p724 = pneg %p398
      %p725 = pneg %p395
      %p726 = pneg %p419
      %p727 = pneg %p416
      %p728 = pneg %p440
      %p729 = pneg %p437
      %p730 = pneg %p461
      %p731 = pneg %p458
      %p732 = pneg %p482
      %p733 = pneg %p479
      %p734 = pneg %p503
      %p735 = pneg %p500
      %p736 = pneg %p524
      %p737 = pneg %p521
      %p738 = pneg %p552
      %p739 = pneg %p549
      %s740 = smul.u32 2, %s38
      %p741 = scmp.lt.s32.totalorder %s37, 1
      %s742 = scalar_select %p741, %s37, 1
      %p743 = scmp.lt.s32.totalorder %s740, 1
      %s744 = scalar_select %p743, %s740, 1
      %s745 = smul.addr %s742, 2
      %s746 = sadd.s32 %s744, %s745
      %s747 = smul.addr %s746, 8
      %s748 = scalar_lea.vmem %s22, %s747
      %p749 = scmp.lt.s32.totalorder %s37, 1
      %s750 = scalar_select %p749, %s37, 1
      %s751 = smul.addr %s750, 4
      %s752 = smul.addr %s751, 4
      %s753 = scalar_lea.vmem %s0, %s752
      %s754 = smul.u32 2, %s38
      %p755 = scmp.lt.s32.totalorder %s37, 1
      %s756 = scalar_select %p755, %s37, 1
      %p757 = scmp.lt.s32.totalorder %s754, 1
      %s758 = scalar_select %p757, %s754, 1
      %s759 = smul.addr %s756, 2
      %s760 = sadd.s32 %s758, %s759
      %s761 = smul.addr %s760, 4
      %s762 = scalar_lea.vmem %s1, %s761
      %s763 = smul.u32 2, %s38
      %p764 = scmp.lt.s32.totalorder %s37, 1
      %s765 = scalar_select %p764, %s37, 1
      %s766 = smul.addr %s765, 2
      %s767 = smul.addr %s766, 4
      %s768 = scalar_lea.vmem %s2, %s767
      %s769 = smul.u32 2, %s38
      %p770 = scmp.lt.s32.totalorder %s769, 1
      %s771 = scalar_select %p770, %s769, 1
      %s772 = smul.addr %s771, 8
      %s773 = scalar_lea.vmem %s3, %s772
      %s774 = smul.u32 2, %s38
      %s775 = smul.u32 2, %s38
      %p776 = scmp.lt.s32.totalorder %s37, 1
      %s777 = scalar_select %p776, %s37, 1
      %p778 = scmp.lt.s32.totalorder %s775, 1
      %s779 = scalar_select %p778, %s775, 1
      %s780 = smul.addr %s777, 2
      %s781 = sadd.s32 %s779, %s780
      %s782 = smul.addr %s781, 8
      %s783 = scalar_lea.vmem %s22, %s782
      %s784 = smul.u32 2, %s38
      %p786 = scmp.eq.s32.totalorder %s38, 0
      // Predicated region
      $region109: #{cfsm_forward.1} parent=107 // pred_check
        %p787 = pneg %p786
      $region110: #{cfsm_forward.1} parent=107 // pred_check_branch
        %789 = sbr.rel (%p787) target = $region112
      $region111: #{cfsm_forward.1} parent=107 // pred_region
        %v790 = vld [vmem:[%s768] sm:$0xf]
        %v791 = vld [vmem:[%s768 + $0x4] sm:$0xf]
        %v792 = vld [vmem:[%s753] sm:$0xf]
        %s793 = scalar_lea.vmem %s753, 4
        %v794 = vld [vmem:[%s793] sm:$0xf]
        %v795 = vmax.bf16 %v792, %v794
        %s796 = scalar_lea.vmem %s753, 8
        %v797 = vld [vmem:[%s796] sm:$0xf]
        %s798 = scalar_lea.vmem %s753, 12
        %v799 = vld [vmem:[%s798] sm:$0xf]
        %v800 = vmax.bf16 %v797, %v799
        %v801 = vmax.bf16 %v795, %v800
        %v802 = vld [vmem:[%s4] sm:$0xf]
        %v803 = vld [vmem:[%s4 + $0x4] sm:$0xf]
        %v804 = vld [vmem:[%s5] sm:$0xf]
        %v805 = vld [vmem:[%s5 + $0x4] sm:$0xf]
        %v808 = vunpack.c.l.b16 %v804
        %v809 = vunpack.c.l.b16 %v805
        %v810 = vpack.c.b16 %v809, %v808
        %v813 = vunpack.c.l.b16 %v790
        %v814 = vunpack.c.l.b16 %v791
        %v815 = vpack.c.b16 %v814, %v813
        %vm817 = vcmask 130048
        %v819 = vsel %vm817, %v810, 0
        %821 = vmatprep.subr.bf16.mxu0 0
        %822 = vmatpush1.bf16.msra.mxu0 0
        %823 = vmatprep.subr.bf16.mxu0 0
        %824 = vmatpush1.bf16.msra.mxu0 0
        %825 = vmatprep.subr.bf16.mxu0 0
        %826 = vmatpush1.bf16.msra.mxu0 0
        %827 = vmatprep.subr.bf16.mxu0 0
        %828 = vmatpush1.bf16.msra.mxu0 0
        %829 = vmatprep.subr.bf16.mxu0 0
        %830 = vmatpush1.bf16.msra.mxu0 0
        %831 = vmatprep.subr.bf16.mxu0 0
        %832 = vmatpush1.bf16.msra.mxu0 0
        %833 = vmatprep.subr.bf16.mxu0 0
        %834 = vmatpush1.bf16.msra.mxu0 0
        %835 = vmatprep.subr.bf16.mxu0 0
        %836 = vmatpush1.bf16.msra.mxu0 %v815
        %837 = vmatprep.subr.bf16.mxu0 0
        %838 = vmatpush2.bf16.msra.mxu0 0
        %839 = vmatprep.subr.bf16.mxu0 0
        %840 = vmatpush2.bf16.msra.mxu0 0
        %841 = vmatprep.subr.bf16.mxu0 0
        %842 = vmatpush2.bf16.msra.mxu0 0
        %843 = vmatprep.subr.bf16.mxu0 0
        %844 = vmatpush2.bf16.msra.mxu0 0
        %845 = vmatprep.subr.bf16.mxu0 0
        %846 = vmatpush2.bf16.msra.mxu0 0
        %847 = vmatprep.subr.bf16.mxu0 0
        %848 = vmatpush2.bf16.msra.mxu0 0
        %849 = vmatprep.subr.bf16.mxu0 0
        %850 = vmatpush2.bf16.msra.mxu0 0
        %851 = vmatprep.subr.bf16.mxu0 0
        %852 = vmatpush2.bf16.msra.mxu0 0
        %853 = vmatprep.mubr.bf16.mxu0 0
        %854 = vmatmul.mubr.bf16.gmra.mxu0 %v819
        %v855 = vpop.f32.mrf.mxu0
        %v856 = vadd.f32 0.0, %v855
        %v857 = vpop.f32.mrf.mxu0
        %v858 = vpop.f32.mrf.mxu0
        %v859 = vadd.f32 0.0, %v858
        %v860 = vpop.f32.mrf.mxu0
        %861 = vdwg.mxu0
        %v864 = vunpack.c.l.b16 %v802
        %v865 = vunpack.c.l.b16 %v803
        %v866 = vpack.c.b16 %v865, %v864
        %vm867 = vcmask 64512
        %v869 = vsel %vm867, %v866, 0
        %vm871 = vcmask 1043456
        %v873 = vsel %vm871, %v801, 0
        %875 = vmatprep.subr.bf16.mxu0 0
        %876 = vmatpush1.bf16.msra.mxu0 0
        %877 = vmatprep.subr.bf16.mxu0 0
        %878 = vmatpush1.bf16.msra.mxu0 0
        %879 = vmatprep.subr.bf16.mxu0 0
        %880 = vmatpush1.bf16.msra.mxu0 0
        %881 = vmatprep.subr.bf16.mxu0 0
        %882 = vmatpush1.bf16.msra.mxu0 0
        %883 = vmatprep.subr.bf16.mxu0 0
        %884 = vmatpush1.bf16.msra.mxu0 0
        %885 = vmatprep.subr.bf16.mxu0 0
        %886 = vmatpush1.bf16.msra.mxu0 0
        %887 = vmatprep.subr.bf16.mxu0 0
        %888 = vmatpush1.bf16.msra.mxu0 0
        %889 = vmatprep.subr.bf16.mxu0 0
        %890 = vmatpush1.bf16.msra.mxu0 %v873
        %891 = vmatprep.subr.bf16.mxu0 0
        %892 = vmatpush2.bf16.msra.mxu0 0
        %893 = vmatprep.subr.bf16.mxu0 0
        %894 = vmatpush2.bf16.msra.mxu0 0
        %895 = vmatprep.subr.bf16.mxu0 0
        %896 = vmatpush2.bf16.msra.mxu0 0
        %897 = vmatprep.subr.bf16.mxu0 0
        %898 = vmatpush2.bf16.msra.mxu0 0
        %899 = vmatprep.subr.bf16.mxu0 0
        %900 = vmatpush2.bf16.msra.mxu0 0
        %901 = vmatprep.subr.bf16.mxu0 0
        %902 = vmatpush2.bf16.msra.mxu0 0
        %903 = vmatprep.subr.bf16.mxu0 0
        %904 = vmatpush2.bf16.msra.mxu0 0
        %905 = vmatprep.subr.bf16.mxu0 0
        %906 = vmatpush2.bf16.msra.mxu0 0
        %907 = vmatprep.mubr.bf16.mxu0 0
        %908 = vmatmul.mubr.bf16.gmra.mxu0 %v869
        %v909 = vpop.f32.mrf.mxu0
        %v910 = vadd.f32 %v856, %v909
        %v911 = vpop.f32.mrf.mxu0
        %v912 = vpop.f32.mrf.mxu0
        %v913 = vadd.f32 %v859, %v912
        %v914 = vpop.f32.mrf.mxu0
        %915 = vdwg.mxu0
        %v916 = vld [vmem:[%s6] sm:$0xff]
        %v917 = vld [vmem:[%s6 + $0x8] sm:$0xff]
        %919 = vset.pattern.permute.xlu0 0
        %920 = vperm.xlu0 %919, %v916
        %v921 = vpop.permute.xlu0 %920
        %924 = vset.pattern.permute.xlu0 0
        %925 = vperm.xlu0 %924, %v917
        %v926 = vpop.permute.xlu0 %925
        %v928 = vmul.f32 %v910, %v921
        %v929 = vmul.f32 %v913, %v926
        %v930 = vld [vmem:[%s7] sm:$0xff]
        %v931 = vld [vmem:[%s7 + $0x8] sm:$0xff]
        %933 = vset.pattern.permute.xlu0 0
        %934 = vperm.xlu0 %933, %v930
        %v935 = vpop.permute.xlu0 %934
        %938 = vset.pattern.permute.xlu0 0
        %939 = vperm.xlu0 %938, %v931
        %v940 = vpop.permute.xlu0 %939
        %v942 = vadd.f32 %v928, %v935
        %v943 = vadd.f32 %v929, %v940
        %v944 = vmax.f32 %v942, 0.0
        %v945 = vmax.f32 %v943, 0.0
        %v946 = vpack.c.bf16 %v945, %v944
        %v947 = vld [vmem:[%s12] sm:$0xf]
        %v949 = vsel %vm817, %v947, 0
        %951 = vmatprep.subr.bf16.mxu0 0
        %952 = vmatpush1.bf16.msra.mxu0 0
        %953 = vmatprep.subr.bf16.mxu0 0
        %954 = vmatpush1.bf16.msra.mxu0 0
        %955 = vmatprep.subr.bf16.mxu0 0
        %956 = vmatpush1.bf16.msra.mxu0 0
        %957 = vmatprep.subr.bf16.mxu0 0
        %958 = vmatpush1.bf16.msra.mxu0 0
        %959 = vmatprep.subr.bf16.mxu0 0
        %960 = vmatpush1.bf16.msra.mxu0 0
        %961 = vmatprep.subr.bf16.mxu0 0
        %962 = vmatpush1.bf16.msra.mxu0 0
        %963 = vmatprep.subr.bf16.mxu0 0
        %964 = vmatpush1.bf16.msra.mxu0 0
        %965 = vmatprep.subr.bf16.mxu0 0
        %966 = vmatpush1.bf16.msra.mxu0 %v946
        %967 = vmatprep.subr.bf16.mxu0 0
        %968 = vmatpush2.bf16.msra.mxu0 0
        %969 = vmatprep.subr.bf16.mxu0 0
        %970 = vmatpush2.bf16.msra.mxu0 0
        %971 = vmatprep.subr.bf16.mxu0 0
        %972 = vmatpush2.bf16.msra.mxu0 0
        %973 = vmatprep.subr.bf16.mxu0 0
        %974 = vmatpush2.bf16.msra.mxu0 0
        %975 = vmatprep.subr.bf16.mxu0 0
        %976 = vmatpush2.bf16.msra.mxu0 0
        %977 = vmatprep.subr.bf16.mxu0 0
        %978 = vmatpush2.bf16.msra.mxu0 0
        %979 = vmatprep.subr.bf16.mxu0 0
        %980 = vmatpush2.bf16.msra.mxu0 0
        %981 = vmatprep.subr.bf16.mxu0 0
        %982 = vmatpush2.bf16.msra.mxu0 0
        %983 = vmatprep.mubr.bf16.mxu0 0
        %984 = vmatmul.mubr.bf16.gmra.mxu0 %v949
        %v985 = vpop.f32.mrf.mxu0
        %v986 = vadd.f32 0.0, %v985
        %v987 = vpop.f32.mrf.mxu0
        %v988 = vpop.f32.mrf.mxu0
        %v989 = vpop.f32.mrf.mxu0
        %990 = vdwg.mxu0
        %vm991 = vcmask 523264
        %992 = vst.msk [vmem:[#allocation2] sm:$0xff] %vm991, %v986
        %v993 = vld [vmem:[%s19] sm:$0xf]
        %v995 = vsel %vm817, %v993, 0
        %997 = vmatprep.subr.bf16.mxu0 0
        %998 = vmatpush1.bf16.msra.mxu0 0
        %999 = vmatprep.subr.bf16.mxu0 0
        %1000 = vmatpush1.bf16.msra.mxu0 0
        %1001 = vmatprep.subr.bf16.mxu0 0
        %1002 = vmatpush1.bf16.msra.mxu0 0
        %1003 = vmatprep.subr.bf16.mxu0 0
        %1004 = vmatpush1.bf16.msra.mxu0 0
        %1005 = vmatprep.subr.bf16.mxu0 0
        %1006 = vmatpush1.bf16.msra.mxu0 0
        %1007 = vmatprep.subr.bf16.mxu0 0
        %1008 = vmatpush1.bf16.msra.mxu0 0
        %1009 = vmatprep.subr.bf16.mxu0 0
        %1010 = vmatpush1.bf16.msra.mxu0 0
        %1011 = vmatprep.subr.bf16.mxu0 0
        %1012 = vmatpush1.bf16.msra.mxu0 %v815
        %1013 = vmatprep.subr.bf16.mxu0 0
        %1014 = vmatpush2.bf16.msra.mxu0 0
        %1015 = vmatprep.subr.bf16.mxu0 0
        %1016 = vmatpush2.bf16.msra.mxu0 0
        %1017 = vmatprep.subr.bf16.mxu0 0
        %1018 = vmatpush2.bf16.msra.mxu0 0
        %1019 = vmatprep.subr.bf16.mxu0 0
        %1020 = vmatpush2.bf16.msra.mxu0 0
        %1021 = vmatprep.subr.bf16.mxu0 0
        %1022 = vmatpush2.bf16.msra.mxu0 0
        %1023 = vmatprep.subr.bf16.mxu0 0
        %1024 = vmatpush2.bf16.msra.mxu0 0
        %1025 = vmatprep.subr.bf16.mxu0 0
        %1026 = vmatpush2.bf16.msra.mxu0 0
        %1027 = vmatprep.subr.bf16.mxu0 0
        %1028 = vmatpush2.bf16.msra.mxu0 0
        %1029 = vmatprep.mubr.bf16.mxu0 0
        %1030 = vmatmul.mubr.bf16.gmra.mxu0 %v995
        %v1031 = vpop.f32.mrf.mxu0
        %v1032 = vadd.f32 0.0, %v1031
        %v1033 = vpop.f32.mrf.mxu0
        %v1034 = vpop.f32.mrf.mxu0
        %v1035 = vpop.f32.mrf.mxu0
        %1036 = vdwg.mxu0
        %1037 = vst.msk [vmem:[#allocation2 + $0x8] sm:$0xff] %vm991, %v1032
        %v1038 = vld [vmem:[%s9] sm:$0xf]
        %v1040 = vsel %vm817, %v1038, 0
        %1042 = vmatprep.subr.bf16.mxu0 0
        %1043 = vmatpush1.bf16.msra.mxu0 0
        %1044 = vmatprep.subr.bf16.mxu0 0
        %1045 = vmatpush1.bf16.msra.mxu0 0
        %1046 = vmatprep.subr.bf16.mxu0 0
        %1047 = vmatpush1.bf16.msra.mxu0 0
        %1048 = vmatprep.subr.bf16.mxu0 0
        %1049 = vmatpush1.bf16.msra.mxu0 0
        %1050 = vmatprep.subr.bf16.mxu0 0
        %1051 = vmatpush1.bf16.msra.mxu0 0
        %1052 = vmatprep.subr.bf16.mxu0 0
        %1053 = vmatpush1.bf16.msra.mxu0 0
        %1054 = vmatprep.subr.bf16.mxu0 0
        %1055 = vmatpush1.bf16.msra.mxu0 0
        %1056 = vmatprep.subr.bf16.mxu0 0
        %1057 = vmatpush1.bf16.msra.mxu0 %v815
        %1058 = vmatprep.subr.bf16.mxu0 0
        %1059 = vmatpush2.bf16.msra.mxu0 0
        %1060 = vmatprep.subr.bf16.mxu0 0
        %1061 = vmatpush2.bf16.msra.mxu0 0
        %1062 = vmatprep.subr.bf16.mxu0 0
        %1063 = vmatpush2.bf16.msra.mxu0 0
        %1064 = vmatprep.subr.bf16.mxu0 0
        %1065 = vmatpush2.bf16.msra.mxu0 0
        %1066 = vmatprep.subr.bf16.mxu0 0
        %1067 = vmatpush2.bf16.msra.mxu0 0
        %1068 = vmatprep.subr.bf16.mxu0 0
        %1069 = vmatpush2.bf16.msra.mxu0 0
        %1070 = vmatprep.subr.bf16.mxu0 0
        %1071 = vmatpush2.bf16.msra.mxu0 0
        %1072 = vmatprep.subr.bf16.mxu0 0
        %1073 = vmatpush2.bf16.msra.mxu0 0
        %1074 = vmatprep.mubr.bf16.mxu0 0
        %1075 = vmatmul.mubr.bf16.gmra.mxu0 %v1040
        %v1076 = vpop.f32.mrf.mxu0
        %v1077 = vadd.f32 0.0, %v1076
        %v1078 = vpop.f32.mrf.mxu0
        %v1079 = vpop.f32.mrf.mxu0
        %v1080 = vpop.f32.mrf.mxu0
        %1081 = vdwg.mxu0
        %1082 = vst.msk [vmem:[#allocation3] sm:$0xff] %vm991, %v1077
      $region112: #{cfsm_forward.1} parent=107 // pred_fallthru
        _
      %v1083 = vld [vmem:[%s762] sm:$0xff]
      %v1084 = vld [vmem:[%s773] sm:$0xff]
      %v1085 = vld [vmem:[%s773 + $0x8] sm:$0xff]
      %v1086 = vld [vmem:[%s773 + $0x10] sm:$0xff]
      %v1087 = vld [vmem:[%s773 + $0x18] sm:$0xff]
      %v1088 = vld [vmem:[%s773 + $0x20] sm:$0xff]
      %v1089 = vld [vmem:[%s773 + $0x28] sm:$0xff]
      %v1090 = vld [vmem:[%s773 + $0x30] sm:$0xff]
      %v1091 = vld [vmem:[%s773 + $0x38] sm:$0xff]
      %v1092 = vld [vmem:[%s773 + $0x40] sm:$0xff]
      %v1093 = vld [vmem:[%s773 + $0x48] sm:$0xff]
      %v1094 = vld [vmem:[%s773 + $0x50] sm:$0xff]
      %v1095 = vld [vmem:[%s773 + $0x58] sm:$0xff]
      %v1096 = vld [vmem:[%s773 + $0x60] sm:$0xff]
      %v1097 = vld [vmem:[%s773 + $0x68] sm:$0xff]
      %v1098 = vld [vmem:[%s773 + $0x70] sm:$0xff]
      %v1099 = vld [vmem:[%s773 + $0x78] sm:$0xff]
      %v1100 = vld [vmem:[%s8] sm:$0xf]
      %v1101 = vld [vmem:[#allocation3] sm:$0xff]
      %vm1102 = vcmask 523264
      %v1104 = vsel %vm1102, %v1101, 0
      %1106 = vmatprep.subr.mxu0 0.0
      %1107 = vmatpush1.msra.mxu0 0.0
      %1108 = vmatprep.subr.mxu0 0.0
      %1109 = vmatpush1.msra.mxu0 0.0
      %1110 = vmatprep.subr.mxu0 0.0
      %1111 = vmatpush1.msra.mxu0 0.0
      %1112 = vmatprep.subr.mxu0 0.0
      %1113 = vmatpush1.msra.mxu0 0.0
      %1114 = vmatprep.subr.mxu0 0.0
      %1115 = vmatpush1.msra.mxu0 0.0
      %1116 = vmatprep.subr.mxu0 0.0
      %1117 = vmatpush1.msra.mxu0 0.0
      %1118 = vmatprep.subr.mxu0 0.0
      %1119 = vmatpush1.msra.mxu0 0.0
      %1120 = vmatprep.subr.mxu0 0.0
      %1121 = vmatpush1.msra.mxu0 0.0
      %1122 = vmatprep.subr.mxu0 %v1099
      %1123 = vmatpush1.msra.mxu0 %v1098
      %1124 = vmatprep.subr.mxu0 %v1097
      %1125 = vmatpush1.msra.mxu0 %v1096
      %1126 = vmatprep.subr.mxu0 %v1095
      %1127 = vmatpush1.msra.mxu0 %v1094
      %1128 = vmatprep.subr.mxu0 %v1093
      %1129 = vmatpush1.msra.mxu0 %v1092
      %1130 = vmatprep.subr.mxu0 %v1091
      %1131 = vmatpush1.msra.mxu0 %v1090
      %1132 = vmatprep.subr.mxu0 %v1089
      %1133 = vmatpush1.msra.mxu0 %v1088
      %1134 = vmatprep.subr.mxu0 %v1087
      %1135 = vmatpush1.msra.mxu0 %v1086
      %1136 = vmatprep.subr.mxu0 %v1085
      %1137 = vmatpush1.msra.mxu0 %v1084
      %1138 = vmatprep.subr.mxu0 0.0
      %1139 = vmatpush2.msra.mxu0 0.0
      %1140 = vmatprep.subr.mxu0 0.0
      %1141 = vmatpush2.msra.mxu0 0.0
      %1142 = vmatprep.subr.mxu0 0.0
      %1143 = vmatpush2.msra.mxu0 0.0
      %1144 = vmatprep.subr.mxu0 0.0
      %1145 = vmatpush2.msra.mxu0 0.0
      %1146 = vmatprep.subr.mxu0 0.0
      %1147 = vmatpush2.msra.mxu0 0.0
      %1148 = vmatprep.subr.mxu0 0.0
      %1149 = vmatpush2.msra.mxu0 0.0
      %1150 = vmatprep.subr.mxu0 0.0
      %1151 = vmatpush2.msra.mxu0 0.0
      %1152 = vmatprep.subr.mxu0 0.0
      %1153 = vmatpush2.msra.mxu0 0.0
      %1154 = vmatprep.subr.mxu0 0.0
      %1155 = vmatpush2.msra.mxu0 0.0
      %1156 = vmatprep.subr.mxu0 0.0
      %1157 = vmatpush2.msra.mxu0 0.0
      %1158 = vmatprep.subr.mxu0 0.0
      %1159 = vmatpush2.msra.mxu0 0.0
      %1160 = vmatprep.subr.mxu0 0.0
      %1161 = vmatpush2.msra.mxu0 0.0
      %1162 = vmatprep.subr.mxu0 0.0
      %1163 = vmatpush2.msra.mxu0 0.0
      %1164 = vmatprep.subr.mxu0 0.0
      %1165 = vmatpush2.msra.mxu0 0.0
      %1166 = vmatprep.subr.mxu0 0.0
      %1167 = vmatpush2.msra.mxu0 0.0
      %1168 = vmatprep.subr.mxu0 0.0
      %1169 = vmatpush2.msra.mxu0 0.0
      %1170 = vmatprep.mubr.f32.mxu0 0.0
      %1171 = vmatmul.mubr.f32.gmra.mxu0 %v1104
      %v1172 = vpop.f32.mrf.mxu0
      %v1173 = vadd.f32 0.0, %v1172
      %v1174 = vpop.f32.mrf.mxu0
      %v1175 = vadd.f32 0.0, %v1174
      %1176 = vdwg.mxu0
      %v1178 = vunpack.c.l.b16 %v1083
      %v1179 = vunpack.c.h.b16 %v1083
      %v1180 = vpack.c.b16 %v1178, %v1178
      %v1181 = vpack.c.b16 %v1179, %v1179
      %vm1182 = vcmask 64512
      %v1184 = vsel %vm1182, %v1100, 0
      %vm1186 = vcmask 1043456
      %v1188 = vsel %vm1186, %v1180, 0
      %v1191 = vsel %vm1186, %v1181, 0
      %1193 = vmatprep.subr.bf16.mxu0 0
      %1194 = vmatpush1.bf16.msra.mxu0 0
      %1195 = vmatprep.subr.bf16.mxu0 0
      %1196 = vmatpush1.bf16.msra.mxu0 0
      %1197 = vmatprep.subr.bf16.mxu0 0
      %1198 = vmatpush1.bf16.msra.mxu0 0
      %1199 = vmatprep.subr.bf16.mxu0 0
      %1200 = vmatpush1.bf16.msra.mxu0 0
      %1201 = vmatprep.subr.bf16.mxu0 0
      %1202 = vmatpush1.bf16.msra.mxu0 0
      %1203 = vmatprep.subr.bf16.mxu0 0
      %1204 = vmatpush1.bf16.msra.mxu0 0
      %1205 = vmatprep.subr.bf16.mxu0 0
      %1206 = vmatpush1.bf16.msra.mxu0 0
      %1207 = vmatprep.subr.bf16.mxu0 %v1191
      %1208 = vmatpush1.bf16.msra.mxu0 %v1188
      %1209 = vmatprep.subr.bf16.mxu0 0
      %1210 = vmatpush2.bf16.msra.mxu0 0
      %1211 = vmatprep.subr.bf16.mxu0 0
      %1212 = vmatpush2.bf16.msra.mxu0 0
      %1213 = vmatprep.subr.bf16.mxu0 0
      %1214 = vmatpush2.bf16.msra.mxu0 0
      %1215 = vmatprep.subr.bf16.mxu0 0
      %1216 = vmatpush2.bf16.msra.mxu0 0
      %1217 = vmatprep.subr.bf16.mxu0 0
      %1218 = vmatpush2.bf16.msra.mxu0 0
      %1219 = vmatprep.subr.bf16.mxu0 0
      %1220 = vmatpush2.bf16.msra.mxu0 0
      %1221 = vmatprep.subr.bf16.mxu0 0
      %1222 = vmatpush2.bf16.msra.mxu0 0
      %1223 = vmatprep.subr.bf16.mxu0 0
      %1224 = vmatpush2.bf16.msra.mxu0 0
      %1225 = vmatprep.mubr.bf16.mxu0 0
      %1226 = vmatmul.mubr.bf16.gmra.mxu0 %v1184
      %v1227 = vpop.f32.mrf.mxu0
      %v1228 = vadd.f32 %v1173, %v1227
      %v1229 = vpop.f32.mrf.mxu0
      %v1230 = vadd.f32 %v1175, %v1229
      %v1231 = vpop.f32.mrf.mxu0
      %v1232 = vpop.f32.mrf.mxu0
      %1233 = vdwg.mxu0
      %v1234 = vld [vmem:[%s10] sm:$0xff]
      %1236 = vset.pattern.permute.xlu0 0
      %1237 = vperm.xlu0 %1236, %v1234
      %v1238 = vpop.permute.xlu0 %1237
      %v1240 = vmul.f32 %v1228, %v1238
      %v1241 = vmul.f32 %v1230, %v1238
      %v1242 = vld [vmem:[%s11] sm:$0xff]
      %1244 = vset.pattern.permute.xlu0 0
      %1245 = vperm.xlu0 %1244, %v1242
      %v1246 = vpop.permute.xlu0 %1245
      %v1248 = vadd.f32 %v1240, %v1246
      %v1249 = vadd.f32 %v1241, %v1246
      %v1250 = vmax.f32 %v1248, 0.0
      %v1251 = vmax.f32 %v1249, 0.0
      %v1252 = vld [vmem:[#allocation2] sm:$0xff]
      %v1253 = vld [vmem:[#allocation2 + $0x8] sm:$0xff]
      %v1255 = vsel %vm1102, %v1252, 0
      %v1258 = vsel %vm1102, %v1253, 0
      %1260 = vmatprep.subr.mxu0 0.0
      %1261 = vmatpush1.msra.mxu0 0.0
      %1262 = vmatprep.subr.mxu0 0.0
      %1263 = vmatpush1.msra.mxu0 0.0
      %1264 = vmatprep.subr.mxu0 0.0
      %1265 = vmatpush1.msra.mxu0 0.0
      %1266 = vmatprep.subr.mxu0 0.0
      %1267 = vmatpush1.msra.mxu0 0.0
      %1268 = vmatprep.subr.mxu0 0.0
      %1269 = vmatpush1.msra.mxu0 0.0
      %1270 = vmatprep.subr.mxu0 0.0
      %1271 = vmatpush1.msra.mxu0 0.0
      %1272 = vmatprep.subr.mxu0 0.0
      %1273 = vmatpush1.msra.mxu0 0.0
      %1274 = vmatprep.subr.mxu0 0.0
      %1275 = vmatpush1.msra.mxu0 0.0
      %1276 = vmatprep.subr.mxu0 %v1099
      %1277 = vmatpush1.msra.mxu0 %v1098
      %1278 = vmatprep.subr.mxu0 %v1097
      %1279 = vmatpush1.msra.mxu0 %v1096
      %1280 = vmatprep.subr.mxu0 %v1095
      %1281 = vmatpush1.msra.mxu0 %v1094
      %1282 = vmatprep.subr.mxu0 %v1093
      %1283 = vmatpush1.msra.mxu0 %v1092
      %1284 = vmatprep.subr.mxu0 %v1091
      %1285 = vmatpush1.msra.mxu0 %v1090
      %1286 = vmatprep.subr.mxu0 %v1089
      %1287 = vmatpush1.msra.mxu0 %v1088
      %1288 = vmatprep.subr.mxu0 %v1087
      %1289 = vmatpush1.msra.mxu0 %v1086
      %1290 = vmatprep.subr.mxu0 %v1085
      %1291 = vmatpush1.msra.mxu0 %v1084
      %1292 = vmatprep.subr.mxu0 0.0
      %1293 = vmatpush2.msra.mxu0 0.0
      %1294 = vmatprep.subr.mxu0 0.0
      %1295 = vmatpush2.msra.mxu0 0.0
      %1296 = vmatprep.subr.mxu0 0.0
      %1297 = vmatpush2.msra.mxu0 0.0
      %1298 = vmatprep.subr.mxu0 0.0
      %1299 = vmatpush2.msra.mxu0 0.0
      %1300 = vmatprep.subr.mxu0 0.0
      %1301 = vmatpush2.msra.mxu0 0.0
      %1302 = vmatprep.subr.mxu0 0.0
      %1303 = vmatpush2.msra.mxu0 0.0
      %1304 = vmatprep.subr.mxu0 0.0
      %1305 = vmatpush2.msra.mxu0 0.0
      %1306 = vmatprep.subr.mxu0 0.0
      %1307 = vmatpush2.msra.mxu0 0.0
      %1308 = vmatprep.subr.mxu0 0.0
      %1309 = vmatpush2.msra.mxu0 0.0
      %1310 = vmatprep.subr.mxu0 0.0
      %1311 = vmatpush2.msra.mxu0 0.0
      %1312 = vmatprep.subr.mxu0 0.0
      %1313 = vmatpush2.msra.mxu0 0.0
      %1314 = vmatprep.subr.mxu0 0.0
      %1315 = vmatpush2.msra.mxu0 0.0
      %1316 = vmatprep.subr.mxu0 0.0
      %1317 = vmatpush2.msra.mxu0 0.0
      %1318 = vmatprep.subr.mxu0 0.0
      %1319 = vmatpush2.msra.mxu0 0.0
      %1320 = vmatprep.subr.mxu0 0.0
      %1321 = vmatpush2.msra.mxu0 0.0
      %1322 = vmatprep.subr.mxu0 0.0
      %1323 = vmatpush2.msra.mxu0 0.0
      %1324 = vmatprep.mubr.f32.mxu0 0.0
      %1325 = vmatmul.mubr.f32.gmra.mxu0 %v1255
      %v1326 = vpop.f32.mrf.mxu0
      %v1327 = vadd.f32 0.0, %v1326
      %v1328 = vpop.f32.mrf.mxu0
      %v1329 = vadd.f32 0.0, %v1328
      %1330 = vmatprep.mubr.f32.mxu0 0.0
      %1331 = vmatmul.mubr.f32.gmra.mxu0 %v1258
      %v1332 = vpop.f32.mrf.mxu0
      %v1333 = vadd.f32 0.0, %v1332
      %v1334 = vpop.f32.mrf.mxu0
      %v1335 = vadd.f32 0.0, %v1334
      %1336 = vdwg.mxu0
      %v1337 = vld [vmem:[%s13] sm:$0xf]
      %v1338 = vpack.c.bf16 %v1250, %v1250
      %v1339 = vpack.c.bf16 %v1251, %v1251
      %v1341 = vsel %vm1182, %v1337, 0
      %v1344 = vsel %vm1186, %v1338, 0
      %v1347 = vsel %vm1186, %v1339, 0
      %1349 = vmatprep.subr.bf16.mxu0 0
      %1350 = vmatpush1.bf16.msra.mxu0 0
      %1351 = vmatprep.subr.bf16.mxu0 0
      %1352 = vmatpush1.bf16.msra.mxu0 0
      %1353 = vmatprep.subr.bf16.mxu0 0
      %1354 = vmatpush1.bf16.msra.mxu0 0
      %1355 = vmatprep.subr.bf16.mxu0 0
      %1356 = vmatpush1.bf16.msra.mxu0 0
      %1357 = vmatprep.subr.bf16.mxu0 0
      %1358 = vmatpush1.bf16.msra.mxu0 0
      %1359 = vmatprep.subr.bf16.mxu0 0
      %1360 = vmatpush1.bf16.msra.mxu0 0
      %1361 = vmatprep.subr.bf16.mxu0 0
      %1362 = vmatpush1.bf16.msra.mxu0 0
      %1363 = vmatprep.subr.bf16.mxu0 %v1347
      %1364 = vmatpush1.bf16.msra.mxu0 %v1344
      %1365 = vmatprep.subr.bf16.mxu0 0
      %1366 = vmatpush2.bf16.msra.mxu0 0
      %1367 = vmatprep.subr.bf16.mxu0 0
      %1368 = vmatpush2.bf16.msra.mxu0 0
      %1369 = vmatprep.subr.bf16.mxu0 0
      %1370 = vmatpush2.bf16.msra.mxu0 0
      %1371 = vmatprep.subr.bf16.mxu0 0
      %1372 = vmatpush2.bf16.msra.mxu0 0
      %1373 = vmatprep.subr.bf16.mxu0 0
      %1374 = vmatpush2.bf16.msra.mxu0 0
      %1375 = vmatprep.subr.bf16.mxu0 0
      %1376 = vmatpush2.bf16.msra.mxu0 0
      %1377 = vmatprep.subr.bf16.mxu0 0
      %1378 = vmatpush2.bf16.msra.mxu0 0
      %1379 = vmatprep.subr.bf16.mxu0 0
      %1380 = vmatpush2.bf16.msra.mxu0 0
      %1381 = vmatprep.mubr.bf16.mxu0 0
      %1382 = vmatmul.mubr.bf16.gmra.mxu0 %v1341
      %v1383 = vpop.f32.mrf.mxu0
      %v1384 = vadd.f32 0.0, %v1383
      %v1385 = vpop.f32.mrf.mxu0
      %v1386 = vadd.f32 0.0, %v1385
      %v1387 = vpop.f32.mrf.mxu0
      %v1388 = vpop.f32.mrf.mxu0
      %1389 = vdwg.mxu0
      %v1390 = vadd.f32 %v1327, %v1384
      %v1391 = vadd.f32 %v1329, %v1386
      %v1392 = vld [vmem:[%s14] sm:$0xff]
      %1394 = vset.pattern.permute.xlu0 0
      %1395 = vperm.xlu0 %1394, %v1392
      %v1396 = vpop.permute.xlu0 %1395
      %v1398 = vmul.f32 %v1390, %v1396
      %v1399 = vmul.f32 %v1391, %v1396
      %v1400 = vld [vmem:[%s15] sm:$0xff]
      %1402 = vset.pattern.permute.xlu0 0
      %1403 = vperm.xlu0 %1402, %v1400
      %v1404 = vpop.permute.xlu0 %1403
      %v1406 = vadd.f32 %v1398, %v1404
      %v1407 = vadd.f32 %v1399, %v1404
      %v1408 = vmax.f32 %v1406, 0.0
      %v1409 = vmax.f32 %v1407, 0.0
      %v1410 = vld [vmem:[%s20] sm:$0xff]
      %1412 = vset.pattern.permute.xlu0 0
      %1413 = vperm.xlu0 %1412, %v1410
      %v1414 = vpop.permute.xlu0 %1413
      %v1416 = vmul.f32 %v1333, %v1414
      %v1417 = vmul.f32 %v1335, %v1414
      %v1418 = vld [vmem:[%s21] sm:$0xff]
      %1420 = vset.pattern.permute.xlu0 0
      %1421 = vperm.xlu0 %1420, %v1418
      %v1422 = vpop.permute.xlu0 %1421
      %v1424 = vadd.f32 %v1416, %v1422
      %v1425 = vadd.f32 %v1417, %v1422
      %v1426 = vmax.f32 %v1424, 0.0
      %v1427 = vmax.f32 %v1425, 0.0
      %v1428 = vld [vmem:[%s16] sm:$0xf]
      %v1430 = vsel %vm1182, %v1428, 0
      %1432 = vmatprep.subr.bf16.mxu0 0
      %1433 = vmatpush1.bf16.msra.mxu0 0
      %1434 = vmatprep.subr.bf16.mxu0 0
      %1435 = vmatpush1.bf16.msra.mxu0 0
      %1436 = vmatprep.subr.bf16.mxu0 0
      %1437 = vmatpush1.bf16.msra.mxu0 0
      %1438 = vmatprep.subr.bf16.mxu0 0
      %1439 = vmatpush1.bf16.msra.mxu0 0
      %1440 = vmatprep.subr.bf16.mxu0 0
      %1441 = vmatpush1.bf16.msra.mxu0 0
      %1442 = vmatprep.subr.bf16.mxu0 0
      %1443 = vmatpush1.bf16.msra.mxu0 0
      %1444 = vmatprep.subr.bf16.mxu0 0
      %1445 = vmatpush1.bf16.msra.mxu0 0
      %1446 = vmatprep.subr.bf16.mxu0 %v1191
      %1447 = vmatpush1.bf16.msra.mxu0 %v1188
      %1448 = vmatprep.subr.bf16.mxu0 0
      %1449 = vmatpush2.bf16.msra.mxu0 0
      %1450 = vmatprep.subr.bf16.mxu0 0
      %1451 = vmatpush2.bf16.msra.mxu0 0
      %1452 = vmatprep.subr.bf16.mxu0 0
      %1453 = vmatpush2.bf16.msra.mxu0 0
      %1454 = vmatprep.subr.bf16.mxu0 0
      %1455 = vmatpush2.bf16.msra.mxu0 0
      %1456 = vmatprep.subr.bf16.mxu0 0
      %1457 = vmatpush2.bf16.msra.mxu0 0
      %1458 = vmatprep.subr.bf16.mxu0 0
      %1459 = vmatpush2.bf16.msra.mxu0 0
      %1460 = vmatprep.subr.bf16.mxu0 0
      %1461 = vmatpush2.bf16.msra.mxu0 0
      %1462 = vmatprep.subr.bf16.mxu0 0
      %1463 = vmatpush2.bf16.msra.mxu0 0
      %1464 = vmatprep.mubr.bf16.mxu0 0
      %1465 = vmatmul.mubr.bf16.gmra.mxu0 %v1430
      %v1466 = vpop.f32.mrf.mxu0
      %v1467 = vadd.f32 0.0, %v1466
      %v1468 = vpop.f32.mrf.mxu0
      %v1469 = vadd.f32 0.0, %v1468
      %v1470 = vpop.f32.mrf.mxu0
      %v1471 = vpop.f32.mrf.mxu0
      %1472 = vdwg.mxu0
      %v1473 = vld [vmem:[%s17] sm:$0xff]
      %1475 = vset.pattern.permute.xlu0 0
      %1476 = vperm.xlu0 %1475, %v1473
      %v1477 = vpop.permute.xlu0 %1476
      %v1479 = vmul.f32 %v1467, %v1477
      %v1480 = vmul.f32 %v1469, %v1477
      %v1481 = vld [vmem:[%s18] sm:$0xff]
      %1483 = vset.pattern.permute.xlu0 0
      %1484 = vperm.xlu0 %1483, %v1481
      %v1485 = vpop.permute.xlu0 %1484
      %v1487 = vadd.f32 %v1479, %v1485
      %v1488 = vadd.f32 %v1480, %v1485
      %v1489 = vmax.f32 %v1487, 0.0
      %v1490 = vmax.f32 %v1488, 0.0
      %v1491 = vadd.f32 %v1489, %v1408
      %v1492 = vadd.f32 %v1490, %v1409
      %v1493 = vadd.f32 %v1491, %v1426
      %v1494 = vadd.f32 %v1492, %v1427
      %1495 = vst [vmem:[%s783] sm:$0xff] %v1493
      %1496 = vst [vmem:[%s783 + $0x8] sm:$0xff] %v1494
      %s1497 = smul.u32 2, %s38
      %p1498 = scmp.lt.s32.totalorder %s37, 1
      %s1499 = scalar_select %p1498, %s37, 1
      %p1500 = scmp.lt.s32.totalorder %s1497, 1
      %s1501 = scalar_select %p1500, %s1497, 1
      %s1502 = smul.addr %s1499, 2
      %s1503 = sadd.s32 %s1501, %s1502
      %s1504 = smul.addr %s1503, 8
      %s1505 = scalar_lea.vmem %s22, %s1504
      // Predicated region
      $region113: #{cfsm_forward.1} parent=107 // pred_check
        %p1506 = pneg %p549
      $region114: #{cfsm_forward.1} parent=107 // pred_check_branch
        %1508 = sbr.rel (%p1506) target = $region116
      $region115: #{cfsm_forward.1} parent=107 // pred_region
        %s1509 = smul.u32 2, %s38
      $region116: #{cfsm_forward.1} parent=107 // pred_fallthru
        _
    $region108: #{cfsm_forward.1} parent=5 // pred_fallthru
      _
    %p1510 = scmp.le.s32.totalorder 2, %s28
    // Predicated region
    $region117: #{cfsm_forward.1} parent=5 // pred_check
      %p1511 = pneg %p1510
    $region118: #{cfsm_forward.1} parent=5 // pred_check_branch
      %1513 = sbr.rel (%p1511) target = $region120
    $region119: #{cfsm_forward.1} parent=5 // pred_region
      %s1514 = ssub.s32 %s28, 2
      // Predicated region
      $region121: #{cfsm_forward.1} parent=119 // pred_check
        %p1515 = pneg %p555
      $region122: #{cfsm_forward.1} parent=119 // pred_check_branch
        %1517 = sbr.rel (%p1515) target = $region124
      $region123: #{cfsm_forward.1} parent=119 // pred_region
        %s1518 = smul.u32 2, %s40
        %p1519 = scmp.lt.s32.totalorder %s39, 1
        %s1520 = scalar_select %p1519, %s39, 1
        %p1521 = scmp.lt.s32.totalorder %s1518, 1
        %s1522 = scalar_select %p1521, %s1518, 1
        %s1523 = smul.addr %s1520, 2
        %s1524 = sadd.s32 %s1522, %s1523
        %s1525 = smul.addr %s1524, 8
        %s1526 = scalar_lea.vmem %s22, %s1525
      $region124: #{cfsm_forward.1} parent=119 // pred_fallthru
        _
    $region120: #{cfsm_forward.1} parent=5 // pred_fallthru
      _
  $region6: #{cfsm_forward.1} parent=0 // loop_footer
    %s32 = sadd.s32 1, %s28
  $region7: #{cfsm_forward.1} parent=0 // loop_footer_branch
    %27 = sbr.rel target = $region3
  $region8: #{cfsm_forward.1} parent=0 // loop_exit
    _

</llo_original>
